<compile_context>
chip_gen: v6e
topology: v6e:2x2x1
jax: 0.10.0
libtpu: 0.0.40
codegen_flags: <defaults>
</compile_context>

<pallas_src>
import jax
import jax.numpy as jnp
import numpy as np
from jax import lax
from jax.experimental import pallas as pl
from jax.experimental.pallas import tpu as pltpu

VOCAB = 2      # len({'<unk>': 0, '<pad>': 1})
EMB = 20
HID = 28
OUT = 2
GP = 128       # padded per-gate lane width (4 gates -> 4 * 128 = 512 lanes)
OUTP = 128     # padded FC output lane width (unmasked output store)


def lstm_model_kernel(tok_ref, tcomb_ref, whh_ref, wfc_ref, bfc_ref,
                      out_ref, xproj_ref, hsum_ref):
    """Forward pass for one sequence group (grid step).

    tok_ref   : (1, S, B, 1)    f32  token ids (0. or 1.)
    tcomb_ref : (VOCAB, 4*GP)   f32  emb @ W_ih^T + (b_ih + b_hh), gate-padded
    whh_ref   : (HID, 4*GP)     f32  W_hh^T, gate-padded
    wfc_ref   : (HID, OUTP)     f32  W_fc^T, lane-padded to 128
    bfc_ref   : (1, OUTP)       f32  b_fc, lane-padded to 128
    out_ref   : (1, S, OUTP)    f32
    xproj_ref : (S, B, 4*GP)    f32  VMEM scratch (precomputed input proj)
    hsum_ref  : (S, HID)        f32  VMEM scratch (per-step batch-summed h)
    """
    S = tok_ref.shape[1]
    B = tok_ref.shape[2]
    H = whh_ref.shape[0]
    GP4 = whh_ref.shape[1]

    # ---- One-shot, vectorized input projection for every timestep ----------
    # TODO(synk): hard-codes VOCAB == 2 (select between two precombined rows);
    # a larger vocab needs a real gather.
    tok = tok_ref[0]                                    # (S, B, 1)
    t0 = tcomb_ref[0:1, :].reshape(1, 1, GP4)
    t1 = tcomb_ref[1:2, :].reshape(1, 1, GP4)
    xproj_ref[...] = jnp.where(tok > 0.5, t1, t0)       # (S, B, 4*GP)

    whh = whh_ref[...]                                  # loop-invariant
    h = jnp.zeros((B, H), jnp.float32)
    c = jnp.zeros((B, H), jnp.float32)

    # ---- Fully unrolled recurrence; only h @ W_hh^T is serial ---------------
    for t in range(S):
        gates = xproj_ref[t] + jnp.dot(h, whh,
                                       preferred_element_type=jnp.float32)
        # Gate slices start at 128-lane boundaries -> no cross-lane moves.
        i_g = jax.nn.sigmoid(gates[:, 0 * GP:0 * GP + H])
        f_g = jax.nn.sigmoid(gates[:, 1 * GP:1 * GP + H])
        g_g = jnp.tanh(gates[:, 2 * GP:2 * GP + H])
        o_g = jax.nn.sigmoid(gates[:, 3 * GP:3 * GP + H])
        c = f_g * c + i_g * g_g
        h = o_g * jnp.tanh(c)
        # torch.sum(out, dim=1): batch-sum for this timestep (small masked
        # store; kept as VMEM scratch for portable lowering).
        hsum_ref[pl.ds(t, 1), :] = jnp.sum(h, axis=0, keepdims=True)

    # ---- One FC matmul + one unmasked full-lane output store ----------------
    out_ref[0] = (jnp.dot(hsum_ref[...], wfc_ref[...],
                          preferred_element_type=jnp.float32)
                  + bfc_ref[...])


def _pad_gate_lanes(w):
    """(rows, 4*HID) -> (rows, 4*GP): each gate block padded to 128 lanes."""
    r = w.shape[0]
    w4 = w.reshape(r, 4, HID)
    return jnp.pad(w4, ((0, 0), (0, 0), (0, GP - HID))).reshape(r, 4 * GP)


def model_forward(x, params):
    """Forward pass of the Model.

    x: (S, B) int32 token ids (batch_first=False)        -> returns (S, 2)
       or (G, S, B) int32 for G independent sequence groups -> (G, S, 2)
    """
    squeeze = (x.ndim == 2)
    if squeeze:
        x = x[None]
    G, S, B = x.shape

    wih_t = params["w_ih"].T                                   # (EMB, 4H)
    whh_t = params["w_hh"].T                                   # (HID, 4H)
    bias = (params["b_ih"] + params["b_hh"])[None, :]          # (1, 4H)
    # Fold embedding + input projection + both biases into a 2-row table.
    t_comb = params["emb"] @ wih_t + bias                      # (VOCAB, 4H)
    t_comb_pad = _pad_gate_lanes(t_comb)                       # (VOCAB, 4*GP)
    whh_pad = _pad_gate_lanes(whh_t)                           # (HID, 4*GP)
    # FC padded to 128 output lanes (unmasked store); sliced back below.
    wfc_pad = jnp.zeros((HID, OUTP), jnp.float32).at[:, :OUT].set(
        params["w_fc"].T)
    bfc_pad = jnp.zeros((1, OUTP), jnp.float32).at[:, :OUT].set(
        params["b_fc"][None, :])
    tok = x.astype(jnp.float32).reshape(G, S, B, 1)            # (G, S, B, 1)

    out = pl.pallas_call(
        lstm_model_kernel,
        out_shape=jax.ShapeDtypeStruct((G, S, OUTP), jnp.float32),
        grid_spec=pltpu.PrefetchScalarGridSpec(
            num_scalar_prefetch=0,
            grid=(G,),
            in_specs=[
                pl.BlockSpec((1, S, B, 1), lambda g: (g, 0, 0, 0)),
                pl.BlockSpec((VOCAB, 4 * GP), lambda g: (0, 0)),
                pl.BlockSpec((HID, 4 * GP), lambda g: (0, 0)),
                pl.BlockSpec((HID, OUTP), lambda g: (0, 0)),
                pl.BlockSpec((1, OUTP), lambda g: (0, 0)),
            ],
            out_specs=pl.BlockSpec((1, S, OUTP), lambda g: (g, 0, 0)),
            scratch_shapes=[
                pltpu.VMEM((S, B, 4 * GP), jnp.float32),   # xproj
                pltpu.VMEM((S, HID), jnp.float32),         # hsum
            ],
        ),
        compiler_params=pltpu.CompilerParams(
            dimension_semantics=("parallel",)),
    )(tok, t_comb_pad, whh_pad, wfc_pad, bfc_pad)

    out = out[:, :, :OUT]                                       # strip lane pad
    return out[0] if squeeze else out


def ref_forward(x, params):
    """Pure-JAX reference mirroring the PyTorch forward (x: (S, B) ids)."""
    emb = params["emb"][x]                                     # (S, B, EMB)
    B = x.shape[1]

    def step(carry, x_t):
        h, c = carry
        gates = (x_t @ params["w_ih"].T + params["b_ih"]
                 + h @ params["w_hh"].T + params["b_hh"])
        i_g, f_g, g_g, o_g = jnp.split(gates, 4, axis=-1)
        i_g = jax.nn.sigmoid(i_g)
        f_g = jax.nn.sigmoid(f_g)
        g_g = jnp.tanh(g_g)
        o_g = jax.nn.sigmoid(o_g)
        c = f_g * c + i_g * g_g
        h = o_g * jnp.tanh(c)
        return (h, c), h

    init = (jnp.zeros((B, HID), jnp.float32), jnp.zeros((B, HID), jnp.float32))
    _, hs = lax.scan(step, init, emb)                          # hs: (S, B, HID)
    s = hs.sum(axis=1)                                         # (S, HID)
    return s @ params["w_fc"].T + params["b_fc"]               # (S, OUT)


def init_params(key):
    ks = jax.random.split(key, 7)
    bound = 1.0 / np.sqrt(HID)
    u = lambda k, shape, b: jax.random.uniform(k, shape, jnp.float32, -b, b)
    return {
        "emb": jax.random.normal(ks[0], (VOCAB, EMB), jnp.float32),
        "w_ih": u(ks[1], (4 * HID, EMB), bound),
        "w_hh": u(ks[2], (4 * HID, HID), bound),
        "b_ih": u(ks[3], (4 * HID,), bound),
        "b_hh": u(ks[4], (4 * HID,), bound),
        "w_fc": u(ks[5], (OUT, HID), 1.0 / np.sqrt(HID)),
        "b_fc": u(ks[6], (OUT,), 1.0 / np.sqrt(HID)),
    }


if __name__ == "__main__":
    key = jax.random.PRNGKey(0)
    pkey, xkey, gkey = jax.random.split(key, 3)
    params = init_params(pkey)

    # --- Module-spec shape: one (S=8, B=2) sequence ------------------------
    S, B = 8, 2
    x = jax.random.randint(xkey, (S, B), 0, VOCAB, dtype=jnp.int32)
    out = jax.block_until_ready(model_forward(x, params))
    ref = jax.block_until_ready(ref_forward(x, params))
    np.testing.assert_allclose(np.asarray(out), np.asarray(ref),
                               rtol=1e-4, atol=1e-4)
    assert out.shape == (S, OUT)

    # --- Batched path: G=8 independent sequences, B=8 fills f32 sublanes ---
    G, Bg = 8, 8
    xg = jax.random.randint(gkey, (G, S, Bg), 0, VOCAB, dtype=jnp.int32)
    outg = jax.block_until_ready(model_forward(xg, params))
    refg = jax.block_until_ready(
        jax.vmap(lambda xi: ref_forward(xi, params))(xg))
    np.testing.assert_allclose(np.asarray(outg), np.asarray(refg),
                               rtol=1e-4, atol=1e-4)
    assert outg.shape == (G, S, OUT)

    print("KERNEL_OK")
</pallas_src>

<mosaic_0001>
module attributes {stable_mosaic.version = 11 : i64} {
  func.func @lstm_model_kernel(%arg0: i32, %arg1: memref<1x8x2x1xf32, #tpu.memory_space<vmem>>, %arg2: memref<2x512xf32, #tpu.memory_space<vmem>>, %arg3: memref<28x512xf32, #tpu.memory_space<vmem>>, %arg4: memref<28x128xf32, #tpu.memory_space<vmem>>, %arg5: memref<1x128xf32, #tpu.memory_space<vmem>>, %arg6: memref<1x8x128xf32, #tpu.memory_space<vmem>>, %arg7: memref<8x2x512xf32, #tpu.memory_space<vmem>>, %arg8: memref<8x28xf32, #tpu.memory_space<vmem>>) attributes {dimension_semantics = [#tpu.dimension_semantics<parallel>], iteration_bounds = array<i64: 1>, scalar_prefetch = 0 : i64, scratch_operands = 2 : i64, tpu.core_type = #tpu.core_type<tc>, window_params = [{transform_indices = @transform_0, window_bounds = array<i64: 1, 8, 2, 1>}, {pipeline_mode = #tpu.pipeline_mode<synchronous>, transform_indices = @transform_1, window_bounds = array<i64: 2, 512>}, {pipeline_mode = #tpu.pipeline_mode<synchronous>, transform_indices = @transform_2, window_bounds = array<i64: 28, 512>}, {pipeline_mode = #tpu.pipeline_mode<synchronous>, transform_indices = @transform_3, window_bounds = array<i64: 28, 128>}, {pipeline_mode = #tpu.pipeline_mode<synchronous>, transform_indices = @transform_4, window_bounds = array<i64: 1, 128>}, {transform_indices = @transform_5, window_bounds = array<i64: 1, 8, 128>}]} {
    %c0 = arith.constant 0 : index
    %c0_0 = arith.constant 0 : index
    %c0_1 = arith.constant 0 : index
    %c0_2 = arith.constant 0 : index
    %0 = vector.load %arg1[%c0, %c0_0, %c0_1, %c0_2] : memref<1x8x2x1xf32, #tpu.memory_space<vmem>>, vector<1x8x2x1xf32>
    %1 = vector.shape_cast %0 : vector<1x8x2x1xf32> to vector<8x2x1xf32>
    %c0_3 = arith.constant 0 : index
    %c0_4 = arith.constant 0 : index
    %2 = vector.load %arg2[%c0_3, %c0_4] : memref<2x512xf32, #tpu.memory_space<vmem>>, vector<1x512xf32>
    %3 = vector.shape_cast %2 : vector<1x512xf32> to vector<1x1x512xf32>
    %c1 = arith.constant 1 : index
    %c0_5 = arith.constant 0 : index
    %4 = vector.load %arg2[%c1, %c0_5] : memref<2x512xf32, #tpu.memory_space<vmem>>, vector<1x512xf32>
    %5 = vector.shape_cast %4 : vector<1x512xf32> to vector<1x1x512xf32>
    %cst = arith.constant 5.000000e-01 : f32
    %6 = vector.broadcast %cst : f32 to vector<8x2x1xf32>
    %7 = arith.cmpf ogt, %1, %6 : vector<8x2x1xf32>
    %8 = vector.shape_cast %7 : vector<8x2x1xi1> to vector<8x2x1xi1>
    %9 = vector.broadcast %8 : vector<8x2x1xi1> to vector<8x2x512xi1>
    %10 = vector.shape_cast %5 : vector<1x1x512xf32> to vector<1x1x512xf32>
    %11 = vector.broadcast %10 : vector<1x1x512xf32> to vector<8x2x512xf32>
    %12 = vector.shape_cast %3 : vector<1x1x512xf32> to vector<1x1x512xf32>
    %13 = vector.broadcast %12 : vector<1x1x512xf32> to vector<8x2x512xf32>
    %14 = arith.select %9, %11, %13 : vector<8x2x512xi1>, vector<8x2x512xf32>
    %c0_6 = arith.constant 0 : index
    %c0_7 = arith.constant 0 : index
    %c0_8 = arith.constant 0 : index
    %15 = vector.load %arg7[%c0_6, %c0_7, %c0_8] : memref<8x2x512xf32, #tpu.memory_space<vmem>>, vector<8x2x512xf32>
    tpu.vector_store %arg7[%c0_6, %c0_7, %c0_8], %14 {strides = array<i32>} : memref<8x2x512xf32, #tpu.memory_space<vmem>>, vector<8x2x512xf32>,
    %c0_9 = arith.constant 0 : index
    %c0_10 = arith.constant 0 : index
    %16 = vector.load %arg3[%c0_9, %c0_10] : memref<28x512xf32, #tpu.memory_space<vmem>>, vector<28x512xf32>
    %cst_11 = arith.constant 0.000000e+00 : f32
    %17 = vector.broadcast %cst_11 : f32 to vector<2x28xf32>
    %cst_12 = arith.constant 0.000000e+00 : f32
    %18 = vector.broadcast %cst_12 : f32 to vector<2x28xf32>
    %c0_13 = arith.constant 0 : index
    %c0_14 = arith.constant 0 : index
    %c0_15 = arith.constant 0 : index
    %19 = vector.load %arg7[%c0_13, %c0_14, %c0_15] : memref<8x2x512xf32, #tpu.memory_space<vmem>>, vector<1x2x512xf32>
    %20 = vector.shape_cast %19 : vector<1x2x512xf32> to vector<2x512xf32>
    %cst_16 = arith.constant dense<0.000000e+00> : vector<2x512xf32>
    %21 = tpu.matmul %17, %16, %cst_16 {dimension_numbers = #tpu.dot_dimension_numbers<[1], [0], [0], [1], [0, 0, 1, 1], [], []>} : vector<2x28xf32>, vector<28x512xf32>, vector<2x512xf32> -> vector<2x512xf32>
    %22 = arith.addf %20, %21 : vector<2x512xf32>
    %23 = vector.extract_strided_slice %22 {offsets = [0, 0], sizes = [2, 28], strides = [1, 1]} : vector<2x512xf32> to vector<2x28xf32>
    %24 = arith.negf %23 : vector<2x28xf32>
    %25 = math.exp %24 : vector<2x28xf32>
    %cst_17 = arith.constant 1.000000e+00 : f32
    %26 = vector.broadcast %cst_17 : f32 to vector<2x28xf32>
    %27 = arith.addf %26, %25 : vector<2x28xf32>
    %28 = arith.divf %26, %27 : vector<2x28xf32>
    %29 = vector.extract_strided_slice %22 {offsets = [0, 128], sizes = [2, 28], strides = [1, 1]} : vector<2x512xf32> to vector<2x28xf32>
    %30 = arith.negf %29 : vector<2x28xf32>
    %31 = math.exp %30 : vector<2x28xf32>
    %cst_18 = arith.constant 1.000000e+00 : f32
    %32 = vector.broadcast %cst_18 : f32 to vector<2x28xf32>
    %33 = arith.addf %32, %31 : vector<2x28xf32>
    %34 = arith.divf %32, %33 : vector<2x28xf32>
    %35 = vector.extract_strided_slice %22 {offsets = [0, 256], sizes = [2, 28], strides = [1, 1]} : vector<2x512xf32> to vector<2x28xf32>
    %36 = math.tanh %35 : vector<2x28xf32>
    %37 = vector.extract_strided_slice %22 {offsets = [0, 384], sizes = [2, 28], strides = [1, 1]} : vector<2x512xf32> to vector<2x28xf32>
    %38 = arith.negf %37 : vector<2x28xf32>
    %39 = math.exp %38 : vector<2x28xf32>
    %cst_19 = arith.constant 1.000000e+00 : f32
    %40 = vector.broadcast %cst_19 : f32 to vector<2x28xf32>
    %41 = arith.addf %40, %39 : vector<2x28xf32>
    %42 = arith.divf %40, %41 : vector<2x28xf32>
    %43 = arith.mulf %34, %18 : vector<2x28xf32>
    %44 = arith.mulf %28, %36 : vector<2x28xf32>
    %45 = arith.addf %43, %44 : vector<2x28xf32>
    %46 = math.tanh %45 : vector<2x28xf32>
    %47 = arith.mulf %42, %46 : vector<2x28xf32>
    %cst_20 = arith.constant dense<0.000000e+00> : vector<28xf32>
    %48 = vector.multi_reduction <add>, %47, %cst_20 [0] : vector<2x28xf32> to vector<28xf32>
    %49 = vector.shape_cast %48 : vector<28xf32> to vector<1x28xf32>
    %c0_21 = arith.constant 0 : index
    %c0_22 = arith.constant 0 : index
    %50 = vector.load %arg8[%c0_21, %c0_22] : memref<8x28xf32, #tpu.memory_space<vmem>>, vector<1x28xf32>
    tpu.vector_store %arg8[%c0_21, %c0_22], %49 {strides = array<i32>} : memref<8x28xf32, #tpu.memory_space<vmem>>, vector<1x28xf32>,
    %c1_23 = arith.constant 1 : index
    %c0_24 = arith.constant 0 : index
    %c0_25 = arith.constant 0 : index
    %51 = vector.load %arg7[%c1_23, %c0_24, %c0_25] : memref<8x2x512xf32, #tpu.memory_space<vmem>>, vector<1x2x512xf32>
    %52 = vector.shape_cast %51 : vector<1x2x512xf32> to vector<2x512xf32>
    %cst_26 = arith.constant dense<0.000000e+00> : vector<2x512xf32>
    %53 = tpu.matmul %47, %16, %cst_26 {dimension_numbers = #tpu.dot_dimension_numbers<[1], [0], [0], [1], [0, 0, 1, 1], [], []>} : vector<2x28xf32>, vector<28x512xf32>, vector<2x512xf32> -> vector<2x512xf32>
    %54 = arith.addf %52, %53 : vector<2x512xf32>
    %55 = vector.extract_strided_slice %54 {offsets = [0, 0], sizes = [2, 28], strides = [1, 1]} : vector<2x512xf32> to vector<2x28xf32>
    %56 = arith.negf %55 : vector<2x28xf32>
    %57 = math.exp %56 : vector<2x28xf32>
    %cst_27 = arith.constant 1.000000e+00 : f32
    %58 = vector.broadcast %cst_27 : f32 to vector<2x28xf32>
    %59 = arith.addf %58, %57 : vector<2x28xf32>
    %60 = arith.divf %58, %59 : vector<2x28xf32>
    %61 = vector.extract_strided_slice %54 {offsets = [0, 128], sizes = [2, 28], strides = [1, 1]} : vector<2x512xf32> to vector<2x28xf32>
    %62 = arith.negf %61 : vector<2x28xf32>
    %63 = math.exp %62 : vector<2x28xf32>
    %cst_28 = arith.constant 1.000000e+00 : f32
    %64 = vector.broadcast %cst_28 : f32 to vector<2x28xf32>
    %65 = arith.addf %64, %63 : vector<2x28xf32>
    %66 = arith.divf %64, %65 : vector<2x28xf32>
    %67 = vector.extract_strided_slice %54 {offsets = [0, 256], sizes = [2, 28], strides = [1, 1]} : vector<2x512xf32> to vector<2x28xf32>
    %68 = math.tanh %67 : vector<2x28xf32>
    %69 = vector.extract_strided_slice %54 {offsets = [0, 384], sizes = [2, 28], strides = [1, 1]} : vector<2x512xf32> to vector<2x28xf32>
    %70 = arith.negf %69 : vector<2x28xf32>
    %71 = math.exp %70 : vector<2x28xf32>
    %cst_29 = arith.constant 1.000000e+00 : f32
    %72 = vector.broadcast %cst_29 : f32 to vector<2x28xf32>
    %73 = arith.addf %72, %71 : vector<2x28xf32>
    %74 = arith.divf %72, %73 : vector<2x28xf32>
    %75 = arith.mulf %66, %45 : vector<2x28xf32>
    %76 = arith.mulf %60, %68 : vector<2x28xf32>
    %77 = arith.addf %75, %76 : vector<2x28xf32>
    %78 = math.tanh %77 : vector<2x28xf32>
    %79 = arith.mulf %74, %78 : vector<2x28xf32>
    %cst_30 = arith.constant dense<0.000000e+00> : vector<28xf32>
    %80 = vector.multi_reduction <add>, %79, %cst_30 [0] : vector<2x28xf32> to vector<28xf32>
    %81 = vector.shape_cast %80 : vector<28xf32> to vector<1x28xf32>
    %c1_31 = arith.constant 1 : index
    %c0_32 = arith.constant 0 : index
    %82 = vector.load %arg8[%c1_31, %c0_32] : memref<8x28xf32, #tpu.memory_space<vmem>>, vector<1x28xf32>
    tpu.vector_store %arg8[%c1_31, %c0_32], %81 {strides = array<i32>} : memref<8x28xf32, #tpu.memory_space<vmem>>, vector<1x28xf32>,
    %c2 = arith.constant 2 : index
    %c0_33 = arith.constant 0 : index
    %c0_34 = arith.constant 0 : index
    %83 = vector.load %arg7[%c2, %c0_33, %c0_34] : memref<8x2x512xf32, #tpu.memory_space<vmem>>, vector<1x2x512xf32>
    %84 = vector.shape_cast %83 : vector<1x2x512xf32> to vector<2x512xf32>
    %cst_35 = arith.constant dense<0.000000e+00> : vector<2x512xf32>
    %85 = tpu.matmul %79, %16, %cst_35 {dimension_numbers = #tpu.dot_dimension_numbers<[1], [0], [0], [1], [0, 0, 1, 1], [], []>} : vector<2x28xf32>, vector<28x512xf32>, vector<2x512xf32> -> vector<2x512xf32>
    %86 = arith.addf %84, %85 : vector<2x512xf32>
    %87 = vector.extract_strided_slice %86 {offsets = [0, 0], sizes = [2, 28], strides = [1, 1]} : vector<2x512xf32> to vector<2x28xf32>
    %88 = arith.negf %87 : vector<2x28xf32>
    %89 = math.exp %88 : vector<2x28xf32>
    %cst_36 = arith.constant 1.000000e+00 : f32
    %90 = vector.broadcast %cst_36 : f32 to vector<2x28xf32>
    %91 = arith.addf %90, %89 : vector<2x28xf32>
    %92 = arith.divf %90, %91 : vector<2x28xf32>
    %93 = vector.extract_strided_slice %86 {offsets = [0, 128], sizes = [2, 28], strides = [1, 1]} : vector<2x512xf32> to vector<2x28xf32>
    %94 = arith.negf %93 : vector<2x28xf32>
    %95 = math.exp %94 : vector<2x28xf32>
    %cst_37 = arith.constant 1.000000e+00 : f32
    %96 = vector.broadcast %cst_37 : f32 to vector<2x28xf32>
    %97 = arith.addf %96, %95 : vector<2x28xf32>
    %98 = arith.divf %96, %97 : vector<2x28xf32>
    %99 = vector.extract_strided_slice %86 {offsets = [0, 256], sizes = [2, 28], strides = [1, 1]} : vector<2x512xf32> to vector<2x28xf32>
    %100 = math.tanh %99 : vector<2x28xf32>
    %101 = vector.extract_strided_slice %86 {offsets = [0, 384], sizes = [2, 28], strides = [1, 1]} : vector<2x512xf32> to vector<2x28xf32>
    %102 = arith.negf %101 : vector<2x28xf32>
    %103 = math.exp %102 : vector<2x28xf32>
    %cst_38 = arith.constant 1.000000e+00 : f32
    %104 = vector.broadcast %cst_38 : f32 to vector<2x28xf32>
    %105 = arith.addf %104, %103 : vector<2x28xf32>
    %106 = arith.divf %104, %105 : vector<2x28xf32>
    %107 = arith.mulf %98, %77 : vector<2x28xf32>
    %108 = arith.mulf %92, %100 : vector<2x28xf32>
    %109 = arith.addf %107, %108 : vector<2x28xf32>
    %110 = math.tanh %109 : vector<2x28xf32>
    %111 = arith.mulf %106, %110 : vector<2x28xf32>
    %cst_39 = arith.constant dense<0.000000e+00> : vector<28xf32>
    %112 = vector.multi_reduction <add>, %111, %cst_39 [0] : vector<2x28xf32> to vector<28xf32>
    %113 = vector.shape_cast %112 : vector<28xf32> to vector<1x28xf32>
    %c2_40 = arith.constant 2 : index
    %c0_41 = arith.constant 0 : index
    %114 = vector.load %arg8[%c2_40, %c0_41] : memref<8x28xf32, #tpu.memory_space<vmem>>, vector<1x28xf32>
    tpu.vector_store %arg8[%c2_40, %c0_41], %113 {strides = array<i32>} : memref<8x28xf32, #tpu.memory_space<vmem>>, vector<1x28xf32>,
    %c3 = arith.constant 3 : index
    %c0_42 = arith.constant 0 : index
    %c0_43 = arith.constant 0 : index
    %115 = vector.load %arg7[%c3, %c0_42, %c0_43] : memref<8x2x512xf32, #tpu.memory_space<vmem>>, vector<1x2x512xf32>
    %116 = vector.shape_cast %115 : vector<1x2x512xf32> to vector<2x512xf32>
    %cst_44 = arith.constant dense<0.000000e+00> : vector<2x512xf32>
    %117 = tpu.matmul %111, %16, %cst_44 {dimension_numbers = #tpu.dot_dimension_numbers<[1], [0], [0], [1], [0, 0, 1, 1], [], []>} : vector<2x28xf32>, vector<28x512xf32>, vector<2x512xf32> -> vector<2x512xf32>
    %118 = arith.addf %116, %117 : vector<2x512xf32>
    %119 = vector.extract_strided_slice %118 {offsets = [0, 0], sizes = [2, 28], strides = [1, 1]} : vector<2x512xf32> to vector<2x28xf32>
    %120 = arith.negf %119 : vector<2x28xf32>
    %121 = math.exp %120 : vector<2x28xf32>
    %cst_45 = arith.constant 1.000000e+00 : f32
    %122 = vector.broadcast %cst_45 : f32 to vector<2x28xf32>
    %123 = arith.addf %122, %121 : vector<2x28xf32>
    %124 = arith.divf %122, %123 : vector<2x28xf32>
    %125 = vector.extract_strided_slice %118 {offsets = [0, 128], sizes = [2, 28], strides = [1, 1]} : vector<2x512xf32> to vector<2x28xf32>
    %126 = arith.negf %125 : vector<2x28xf32>
    %127 = math.exp %126 : vector<2x28xf32>
    %cst_46 = arith.constant 1.000000e+00 : f32
    %128 = vector.broadcast %cst_46 : f32 to vector<2x28xf32>
    %129 = arith.addf %128, %127 : vector<2x28xf32>
    %130 = arith.divf %128, %129 : vector<2x28xf32>
    %131 = vector.extract_strided_slice %118 {offsets = [0, 256], sizes = [2, 28], strides = [1, 1]} : vector<2x512xf32> to vector<2x28xf32>
    %132 = math.tanh %131 : vector<2x28xf32>
    %133 = vector.extract_strided_slice %118 {offsets = [0, 384], sizes = [2, 28], strides = [1, 1]} : vector<2x512xf32> to vector<2x28xf32>
    %134 = arith.negf %133 : vector<2x28xf32>
    %135 = math.exp %134 : vector<2x28xf32>
    %cst_47 = arith.constant 1.000000e+00 : f32
    %136 = vector.broadcast %cst_47 : f32 to vector<2x28xf32>
    %137 = arith.addf %136, %135 : vector<2x28xf32>
    %138 = arith.divf %136, %137 : vector<2x28xf32>
    %139 = arith.mulf %130, %109 : vector<2x28xf32>
    %140 = arith.mulf %124, %132 : vector<2x28xf32>
    %141 = arith.addf %139, %140 : vector<2x28xf32>
    %142 = math.tanh %141 : vector<2x28xf32>
    %143 = arith.mulf %138, %142 : vector<2x28xf32>
    %cst_48 = arith.constant dense<0.000000e+00> : vector<28xf32>
    %144 = vector.multi_reduction <add>, %143, %cst_48 [0] : vector<2x28xf32> to vector<28xf32>
    %145 = vector.shape_cast %144 : vector<28xf32> to vector<1x28xf32>
    %c3_49 = arith.constant 3 : index
    %c0_50 = arith.constant 0 : index
    %146 = vector.load %arg8[%c3_49, %c0_50] : memref<8x28xf32, #tpu.memory_space<vmem>>, vector<1x28xf32>
    tpu.vector_store %arg8[%c3_49, %c0_50], %145 {strides = array<i32>} : memref<8x28xf32, #tpu.memory_space<vmem>>, vector<1x28xf32>,
    %c4 = arith.constant 4 : index
    %c0_51 = arith.constant 0 : index
    %c0_52 = arith.constant 0 : index
    %147 = vector.load %arg7[%c4, %c0_51, %c0_52] : memref<8x2x512xf32, #tpu.memory_space<vmem>>, vector<1x2x512xf32>
    %148 = vector.shape_cast %147 : vector<1x2x512xf32> to vector<2x512xf32>
    %cst_53 = arith.constant dense<0.000000e+00> : vector<2x512xf32>
    %149 = tpu.matmul %143, %16, %cst_53 {dimension_numbers = #tpu.dot_dimension_numbers<[1], [0], [0], [1], [0, 0, 1, 1], [], []>} : vector<2x28xf32>, vector<28x512xf32>, vector<2x512xf32> -> vector<2x512xf32>
    %150 = arith.addf %148, %149 : vector<2x512xf32>
    %151 = vector.extract_strided_slice %150 {offsets = [0, 0], sizes = [2, 28], strides = [1, 1]} : vector<2x512xf32> to vector<2x28xf32>
    %152 = arith.negf %151 : vector<2x28xf32>
    %153 = math.exp %152 : vector<2x28xf32>
    %cst_54 = arith.constant 1.000000e+00 : f32
    %154 = vector.broadcast %cst_54 : f32 to vector<2x28xf32>
    %155 = arith.addf %154, %153 : vector<2x28xf32>
    %156 = arith.divf %154, %155 : vector<2x28xf32>
    %157 = vector.extract_strided_slice %150 {offsets = [0, 128], sizes = [2, 28], strides = [1, 1]} : vector<2x512xf32> to vector<2x28xf32>
    %158 = arith.negf %157 : vector<2x28xf32>
    %159 = math.exp %158 : vector<2x28xf32>
    %cst_55 = arith.constant 1.000000e+00 : f32
    %160 = vector.broadcast %cst_55 : f32 to vector<2x28xf32>
    %161 = arith.addf %160, %159 : vector<2x28xf32>
    %162 = arith.divf %160, %161 : vector<2x28xf32>
    %163 = vector.extract_strided_slice %150 {offsets = [0, 256], sizes = [2, 28], strides = [1, 1]} : vector<2x512xf32> to vector<2x28xf32>
    %164 = math.tanh %163 : vector<2x28xf32>
    %165 = vector.extract_strided_slice %150 {offsets = [0, 384], sizes = [2, 28], strides = [1, 1]} : vector<2x512xf32> to vector<2x28xf32>
    %166 = arith.negf %165 : vector<2x28xf32>
    %167 = math.exp %166 : vector<2x28xf32>
    %cst_56 = arith.constant 1.000000e+00 : f32
    %168 = vector.broadcast %cst_56 : f32 to vector<2x28xf32>
    %169 = arith.addf %168, %167 : vector<2x28xf32>
    %170 = arith.divf %168, %169 : vector<2x28xf32>
    %171 = arith.mulf %162, %141 : vector<2x28xf32>
    %172 = arith.mulf %156, %164 : vector<2x28xf32>
    %173 = arith.addf %171, %172 : vector<2x28xf32>
    %174 = math.tanh %173 : vector<2x28xf32>
    %175 = arith.mulf %170, %174 : vector<2x28xf32>
    %cst_57 = arith.constant dense<0.000000e+00> : vector<28xf32>
    %176 = vector.multi_reduction <add>, %175, %cst_57 [0] : vector<2x28xf32> to vector<28xf32>
    %177 = vector.shape_cast %176 : vector<28xf32> to vector<1x28xf32>
    %c4_58 = arith.constant 4 : index
    %c0_59 = arith.constant 0 : index
    %178 = vector.load %arg8[%c4_58, %c0_59] : memref<8x28xf32, #tpu.memory_space<vmem>>, vector<1x28xf32>
    tpu.vector_store %arg8[%c4_58, %c0_59], %177 {strides = array<i32>} : memref<8x28xf32, #tpu.memory_space<vmem>>, vector<1x28xf32>,
    %c5 = arith.constant 5 : index
    %c0_60 = arith.constant 0 : index
    %c0_61 = arith.constant 0 : index
    %179 = vector.load %arg7[%c5, %c0_60, %c0_61] : memref<8x2x512xf32, #tpu.memory_space<vmem>>, vector<1x2x512xf32>
    %180 = vector.shape_cast %179 : vector<1x2x512xf32> to vector<2x512xf32>
    %cst_62 = arith.constant dense<0.000000e+00> : vector<2x512xf32>
    %181 = tpu.matmul %175, %16, %cst_62 {dimension_numbers = #tpu.dot_dimension_numbers<[1], [0], [0], [1], [0, 0, 1, 1], [], []>} : vector<2x28xf32>, vector<28x512xf32>, vector<2x512xf32> -> vector<2x512xf32>
    %182 = arith.addf %180, %181 : vector<2x512xf32>
    %183 = vector.extract_strided_slice %182 {offsets = [0, 0], sizes = [2, 28], strides = [1, 1]} : vector<2x512xf32> to vector<2x28xf32>
    %184 = arith.negf %183 : vector<2x28xf32>
    %185 = math.exp %184 : vector<2x28xf32>
    %cst_63 = arith.constant 1.000000e+00 : f32
    %186 = vector.broadcast %cst_63 : f32 to vector<2x28xf32>
    %187 = arith.addf %186, %185 : vector<2x28xf32>
    %188 = arith.divf %186, %187 : vector<2x28xf32>
    %189 = vector.extract_strided_slice %182 {offsets = [0, 128], sizes = [2, 28], strides = [1, 1]} : vector<2x512xf32> to vector<2x28xf32>
    %190 = arith.negf %189 : vector<2x28xf32>
    %191 = math.exp %190 : vector<2x28xf32>
    %cst_64 = arith.constant 1.000000e+00 : f32
    %192 = vector.broadcast %cst_64 : f32 to vector<2x28xf32>
    %193 = arith.addf %192, %191 : vector<2x28xf32>
    %194 = arith.divf %192, %193 : vector<2x28xf32>
    %195 = vector.extract_strided_slice %182 {offsets = [0, 256], sizes = [2, 28], strides = [1, 1]} : vector<2x512xf32> to vector<2x28xf32>
    %196 = math.tanh %195 : vector<2x28xf32>
    %197 = vector.extract_strided_slice %182 {offsets = [0, 384], sizes = [2, 28], strides = [1, 1]} : vector<2x512xf32> to vector<2x28xf32>
    %198 = arith.negf %197 : vector<2x28xf32>
    %199 = math.exp %198 : vector<2x28xf32>
    %cst_65 = arith.constant 1.000000e+00 : f32
    %200 = vector.broadcast %cst_65 : f32 to vector<2x28xf32>
    %201 = arith.addf %200, %199 : vector<2x28xf32>
    %202 = arith.divf %200, %201 : vector<2x28xf32>
    %203 = arith.mulf %194, %173 : vector<2x28xf32>
    %204 = arith.mulf %188, %196 : vector<2x28xf32>
    %205 = arith.addf %203, %204 : vector<2x28xf32>
    %206 = math.tanh %205 : vector<2x28xf32>
    %207 = arith.mulf %202, %206 : vector<2x28xf32>
    %cst_66 = arith.constant dense<0.000000e+00> : vector<28xf32>
    %208 = vector.multi_reduction <add>, %207, %cst_66 [0] : vector<2x28xf32> to vector<28xf32>
    %209 = vector.shape_cast %208 : vector<28xf32> to vector<1x28xf32>
    %c5_67 = arith.constant 5 : index
    %c0_68 = arith.constant 0 : index
    %210 = vector.load %arg8[%c5_67, %c0_68] : memref<8x28xf32, #tpu.memory_space<vmem>>, vector<1x28xf32>
    tpu.vector_store %arg8[%c5_67, %c0_68], %209 {strides = array<i32>} : memref<8x28xf32, #tpu.memory_space<vmem>>, vector<1x28xf32>,
    %c6 = arith.constant 6 : index
    %c0_69 = arith.constant 0 : index
    %c0_70 = arith.constant 0 : index
    %211 = vector.load %arg7[%c6, %c0_69, %c0_70] : memref<8x2x512xf32, #tpu.memory_space<vmem>>, vector<1x2x512xf32>
    %212 = vector.shape_cast %211 : vector<1x2x512xf32> to vector<2x512xf32>
    %cst_71 = arith.constant dense<0.000000e+00> : vector<2x512xf32>
    %213 = tpu.matmul %207, %16, %cst_71 {dimension_numbers = #tpu.dot_dimension_numbers<[1], [0], [0], [1], [0, 0, 1, 1], [], []>} : vector<2x28xf32>, vector<28x512xf32>, vector<2x512xf32> -> vector<2x512xf32>
    %214 = arith.addf %212, %213 : vector<2x512xf32>
    %215 = vector.extract_strided_slice %214 {offsets = [0, 0], sizes = [2, 28], strides = [1, 1]} : vector<2x512xf32> to vector<2x28xf32>
    %216 = arith.negf %215 : vector<2x28xf32>
    %217 = math.exp %216 : vector<2x28xf32>
    %cst_72 = arith.constant 1.000000e+00 : f32
    %218 = vector.broadcast %cst_72 : f32 to vector<2x28xf32>
    %219 = arith.addf %218, %217 : vector<2x28xf32>
    %220 = arith.divf %218, %219 : vector<2x28xf32>
    %221 = vector.extract_strided_slice %214 {offsets = [0, 128], sizes = [2, 28], strides = [1, 1]} : vector<2x512xf32> to vector<2x28xf32>
    %222 = arith.negf %221 : vector<2x28xf32>
    %223 = math.exp %222 : vector<2x28xf32>
    %cst_73 = arith.constant 1.000000e+00 : f32
    %224 = vector.broadcast %cst_73 : f32 to vector<2x28xf32>
    %225 = arith.addf %224, %223 : vector<2x28xf32>
    %226 = arith.divf %224, %225 : vector<2x28xf32>
    %227 = vector.extract_strided_slice %214 {offsets = [0, 256], sizes = [2, 28], strides = [1, 1]} : vector<2x512xf32> to vector<2x28xf32>
    %228 = math.tanh %227 : vector<2x28xf32>
    %229 = vector.extract_strided_slice %214 {offsets = [0, 384], sizes = [2, 28], strides = [1, 1]} : vector<2x512xf32> to vector<2x28xf32>
    %230 = arith.negf %229 : vector<2x28xf32>
    %231 = math.exp %230 : vector<2x28xf32>
    %cst_74 = arith.constant 1.000000e+00 : f32
    %232 = vector.broadcast %cst_74 : f32 to vector<2x28xf32>
    %233 = arith.addf %232, %231 : vector<2x28xf32>
    %234 = arith.divf %232, %233 : vector<2x28xf32>
    %235 = arith.mulf %226, %205 : vector<2x28xf32>
    %236 = arith.mulf %220, %228 : vector<2x28xf32>
    %237 = arith.addf %235, %236 : vector<2x28xf32>
    %238 = math.tanh %237 : vector<2x28xf32>
    %239 = arith.mulf %234, %238 : vector<2x28xf32>
    %cst_75 = arith.constant dense<0.000000e+00> : vector<28xf32>
    %240 = vector.multi_reduction <add>, %239, %cst_75 [0] : vector<2x28xf32> to vector<28xf32>
    %241 = vector.shape_cast %240 : vector<28xf32> to vector<1x28xf32>
    %c6_76 = arith.constant 6 : index
    %c0_77 = arith.constant 0 : index
    %242 = vector.load %arg8[%c6_76, %c0_77] : memref<8x28xf32, #tpu.memory_space<vmem>>, vector<1x28xf32>
    tpu.vector_store %arg8[%c6_76, %c0_77], %241 {strides = array<i32>} : memref<8x28xf32, #tpu.memory_space<vmem>>, vector<1x28xf32>,
    %c7 = arith.constant 7 : index
    %c0_78 = arith.constant 0 : index
    %c0_79 = arith.constant 0 : index
    %243 = vector.load %arg7[%c7, %c0_78, %c0_79] : memref<8x2x512xf32, #tpu.memory_space<vmem>>, vector<1x2x512xf32>
    %244 = vector.shape_cast %243 : vector<1x2x512xf32> to vector<2x512xf32>
    %cst_80 = arith.constant dense<0.000000e+00> : vector<2x512xf32>
    %245 = tpu.matmul %239, %16, %cst_80 {dimension_numbers = #tpu.dot_dimension_numbers<[1], [0], [0], [1], [0, 0, 1, 1], [], []>} : vector<2x28xf32>, vector<28x512xf32>, vector<2x512xf32> -> vector<2x512xf32>
    %246 = arith.addf %244, %245 : vector<2x512xf32>
    %247 = vector.extract_strided_slice %246 {offsets = [0, 0], sizes = [2, 28], strides = [1, 1]} : vector<2x512xf32> to vector<2x28xf32>
    %248 = arith.negf %247 : vector<2x28xf32>
    %249 = math.exp %248 : vector<2x28xf32>
    %cst_81 = arith.constant 1.000000e+00 : f32
    %250 = vector.broadcast %cst_81 : f32 to vector<2x28xf32>
    %251 = arith.addf %250, %249 : vector<2x28xf32>
    %252 = arith.divf %250, %251 : vector<2x28xf32>
    %253 = vector.extract_strided_slice %246 {offsets = [0, 128], sizes = [2, 28], strides = [1, 1]} : vector<2x512xf32> to vector<2x28xf32>
    %254 = arith.negf %253 : vector<2x28xf32>
    %255 = math.exp %254 : vector<2x28xf32>
    %cst_82 = arith.constant 1.000000e+00 : f32
    %256 = vector.broadcast %cst_82 : f32 to vector<2x28xf32>
    %257 = arith.addf %256, %255 : vector<2x28xf32>
    %258 = arith.divf %256, %257 : vector<2x28xf32>
    %259 = vector.extract_strided_slice %246 {offsets = [0, 256], sizes = [2, 28], strides = [1, 1]} : vector<2x512xf32> to vector<2x28xf32>
    %260 = math.tanh %259 : vector<2x28xf32>
    %261 = vector.extract_strided_slice %246 {offsets = [0, 384], sizes = [2, 28], strides = [1, 1]} : vector<2x512xf32> to vector<2x28xf32>
    %262 = arith.negf %261 : vector<2x28xf32>
    %263 = math.exp %262 : vector<2x28xf32>
    %cst_83 = arith.constant 1.000000e+00 : f32
    %264 = vector.broadcast %cst_83 : f32 to vector<2x28xf32>
    %265 = arith.addf %264, %263 : vector<2x28xf32>
    %266 = arith.divf %264, %265 : vector<2x28xf32>
    %267 = arith.mulf %258, %237 : vector<2x28xf32>
    %268 = arith.mulf %252, %260 : vector<2x28xf32>
    %269 = arith.addf %267, %268 : vector<2x28xf32>
    %270 = math.tanh %269 : vector<2x28xf32>
    %271 = arith.mulf %266, %270 : vector<2x28xf32>
    %cst_84 = arith.constant dense<0.000000e+00> : vector<28xf32>
    %272 = vector.multi_reduction <add>, %271, %cst_84 [0] : vector<2x28xf32> to vector<28xf32>
    %273 = vector.shape_cast %272 : vector<28xf32> to vector<1x28xf32>
    %c7_85 = arith.constant 7 : index
    %c0_86 = arith.constant 0 : index
    %274 = vector.load %arg8[%c7_85, %c0_86] : memref<8x28xf32, #tpu.memory_space<vmem>>, vector<1x28xf32>
    tpu.vector_store %arg8[%c7_85, %c0_86], %273 {strides = array<i32>} : memref<8x28xf32, #tpu.memory_space<vmem>>, vector<1x28xf32>,
    %c0_87 = arith.constant 0 : index
    %c0_88 = arith.constant 0 : index
    %275 = vector.load %arg8[%c0_87, %c0_88] : memref<8x28xf32, #tpu.memory_space<vmem>>, vector<8x28xf32>
    %c0_89 = arith.constant 0 : index
    %c0_90 = arith.constant 0 : index
    %276 = vector.load %arg4[%c0_89, %c0_90] : memref<28x128xf32, #tpu.memory_space<vmem>>, vector<28x128xf32>
    %cst_91 = arith.constant dense<0.000000e+00> : vector<8x128xf32>
    %277 = tpu.matmul %275, %276, %cst_91 {dimension_numbers = #tpu.dot_dimension_numbers<[1], [0], [0], [1], [0, 0, 1, 1], [], []>} : vector<8x28xf32>, vector<28x128xf32>, vector<8x128xf32> -> vector<8x128xf32>
    %c0_92 = arith.constant 0 : index
    %c0_93 = arith.constant 0 : index
    %278 = vector.load %arg5[%c0_92, %c0_93] : memref<1x128xf32, #tpu.memory_space<vmem>>, vector<1x128xf32>
    %279 = vector.broadcast %278 : vector<1x128xf32> to vector<8x128xf32>
    %280 = arith.addf %277, %279 : vector<8x128xf32>
    %c0_94 = arith.constant 0 : index
    %c0_95 = arith.constant 0 : index
    %c0_96 = arith.constant 0 : index
    %281 = vector.load %arg6[%c0_94, %c0_95, %c0_96] : memref<1x8x128xf32, #tpu.memory_space<vmem>>, vector<1x8x128xf32>
    %282 = vector.shape_cast %281 : vector<1x8x128xf32> to vector<8x128xf32>
    %283 = vector.shape_cast %280 : vector<8x128xf32> to vector<1x8x128xf32>
    tpu.vector_store %arg6[%c0_94, %c0_95, %c0_96], %283 {strides = array<i32>} : memref<1x8x128xf32, #tpu.memory_space<vmem>>, vector<1x8x128xf32>,
    return
  }
  func.func @transform_0(%arg0: i32) -> (i32, i32, i32, i32) {
    %c0_i32 = arith.constant 0 : i32
    %c0_i32_0 = arith.constant 0 : i32
    %c0_i32_1 = arith.constant 0 : i32
    %c0_i32_2 = arith.constant 0 : i32
    return %arg0, %c0_i32, %c0_i32_0, %c0_i32_1 : i32, i32, i32, i32
  }
  func.func @transform_1(%arg0: i32) -> (i32, i32) {
    %c0_i32 = arith.constant 0 : i32
    %c0_i32_0 = arith.constant 0 : i32
    %c0_i32_1 = arith.constant 0 : i32
    return %c0_i32, %c0_i32_0 : i32, i32
  }
  func.func @transform_2(%arg0: i32) -> (i32, i32) {
    %c0_i32 = arith.constant 0 : i32
    %c0_i32_0 = arith.constant 0 : i32
    %c0_i32_1 = arith.constant 0 : i32
    return %c0_i32, %c0_i32_0 : i32, i32
  }
  func.func @transform_3(%arg0: i32) -> (i32, i32) {
    %c0_i32 = arith.constant 0 : i32
    %c0_i32_0 = arith.constant 0 : i32
    %c0_i32_1 = arith.constant 0 : i32
    return %c0_i32, %c0_i32_0 : i32, i32
  }
  func.func @transform_4(%arg0: i32) -> (i32, i32) {
    %c0_i32 = arith.constant 0 : i32
    %c0_i32_0 = arith.constant 0 : i32
    %c0_i32_1 = arith.constant 0 : i32
    return %c0_i32, %c0_i32_0 : i32, i32
  }
  func.func @transform_5(%arg0: i32) -> (i32, i32, i32) {
    %c0_i32 = arith.constant 0 : i32
    %c0_i32_0 = arith.constant 0 : i32
    %c0_i32_1 = arith.constant 0 : i32
    return %arg0, %c0_i32, %c0_i32_0 : i32, i32, i32
  }
}

</mosaic_0001>

<llo_original>
// kernel: tpu_custom_call.1
$region0: #{tpu_custom_call.1}
  #allocation0 [shape = 'u32[]', space=smem, size = 0x4, offset = 0x4, fixed_abs, tag = 'smem constant byte address 0x4 - core index']
  #allocation1 [shape = 'u32[144,128]{1,0:T(1,128)}', space=vmem, size = 0x12000, scoped, tag = 'internal scratch']
  #allocation2 [shape = 'f32[8,2,512]{2,1,0:T(2,128)}', space=vmem, size = 0x8000, scoped, tag = 'scratch operand']
  #allocation3 [shape = 'f32[8,28]{1,0:T(8,128)}', space=vmem, size = 0x1000, scoped, tag = 'scratch operand']
  %s0 = inlined_call_operand.vmem [shape: f32[1,8,2,1], index: 0, kind: input, shape index: {}]
  %s1 = inlined_call_operand.vmem [shape: f32[2,512], index: 1, kind: input, shape index: {}]
  %s2 = inlined_call_operand.hbm [shape: f32[28,512], index: 2, kind: input, shape index: {}]
  %s3 = inlined_call_operand.hbm [shape: f32[28,128], index: 3, kind: input, shape index: {}]
  %s4 = inlined_call_operand.vmem [shape: f32[1,128], index: 4, kind: input, shape index: {}]
  %s5 = inlined_call_operand.hbm [shape: f32[1,8,128], index: 5, kind: output, shape index: {}]
  %s6 = sld [smem:[#allocation0]]
  $region38: #{tpu_custom_call.1} parent=0
    _
  %s8 = ssub.s32 1, %s6
  %s9 = scalar_select 0, %s8, %s6
  $region1: #{tpu_custom_call.1} parent=0
    #allocation4 [shape = 'u8[65536]{0}', space=vmem, size = 0x10000, scoped, tag = 'input window, operand 2, single buffered']
    #allocation5 [shape = 's32[1]{0}', space=sflag, size = 0x4, scoped, tag = 'scoped memory for tpu_custom_call.1']
    #allocation6 [shape = 's32[1]{0}', space=sflag, size = 0x4, scoped, tag = 'scoped memory for tpu_custom_call.1']
    #allocation7 [shape = 'u8[16384]{0}', space=vmem, size = 0x4000, scoped, tag = 'input window, operand 3, single buffered']
    #allocation8 [shape = 's32[1]{0}', space=sflag, size = 0x4, scoped, tag = 'scoped memory for tpu_custom_call.1']
    #allocation9 [shape = 'u8[4096]{0}', space=vmem, size = 0x1000, scoped, tag = 'output window, operand 0, single buffered']
    %10 = vsyncpa [#allocation5], 0
    %11 = vsyncpa [#allocation8], 0
    %12 = vsyncpa [#allocation6], 0
    // Predicated region
    $region2: #{tpu_custom_call.1} parent=1 // pred_check
      _
    $region3: #{tpu_custom_call.1} parent=1 // pred_check_branch
      %14 = sbr.rel (0) target = $region5
    $region4: #{tpu_custom_call.1} parent=1 // pred_region
      _
    $region5: #{tpu_custom_call.1} parent=1 // pred_fallthru
      _
    // Predicated region
    $region6: #{tpu_custom_call.1} parent=1 // pred_check
      _
    $region7: #{tpu_custom_call.1} parent=1 // pred_check_branch
      %16 = sbr.rel (0) target = $region9
    $region8: #{tpu_custom_call.1} parent=1 // pred_region
      _
    $region9: #{tpu_custom_call.1} parent=1 // pred_fallthru
      _
    // Predicated region
    $region10: #{tpu_custom_call.1} parent=1 // pred_check
      _
    $region11: #{tpu_custom_call.1} parent=1 // pred_check_branch
      %18 = sbr.rel (0) target = $region13
    $region12: #{tpu_custom_call.1} parent=1 // pred_region
      %s20 = ssub.s32 2048, 2048
      %21 = vsyncadd [#allocation5], %s20
      %s22 = sshll.u32 [#allocation4], 4
      %s23 = int_to_ptr.vmem [resolvable:$true] %s22
      %28 = dma.hbm_to_vmem [thread:$0]  %s2, 2048, %s23, [#allocation5], 512, 512, 32
    $region13: #{tpu_custom_call.1} parent=1 // pred_fallthru
      _
    // Predicated region
    $region14: #{tpu_custom_call.1} parent=1 // pred_check
      _
    $region15: #{tpu_custom_call.1} parent=1 // pred_check_branch
      %30 = sbr.rel (0) target = $region17
    $region16: #{tpu_custom_call.1} parent=1 // pred_region
      %s32 = ssub.s32 512, 512
      %33 = vsyncadd [#allocation8], %s32
      %s34 = sshll.u32 [#allocation7], 4
      %s35 = int_to_ptr.vmem [resolvable:$true] %s34
      %40 = dma.hbm_to_vmem [thread:$0]  %s3, 512, %s35, [#allocation8], 128, 128, 8
    $region17: #{tpu_custom_call.1} parent=1 // pred_fallthru
      _
    // Predicated region
    $region18: #{tpu_custom_call.1} parent=1 // pred_check
      _
    $region19: #{tpu_custom_call.1} parent=1 // pred_check_branch
      %42 = sbr.rel (0) target = $region21
    $region20: #{tpu_custom_call.1} parent=1 // pred_region
      _
    $region21: #{tpu_custom_call.1} parent=1 // pred_fallthru
      _
    // Predicated region
    $region22: #{tpu_custom_call.1} parent=1 // pred_check
      _
    $region23: #{tpu_custom_call.1} parent=1 // pred_check_branch
      %44 = sbr.rel (0) target = $region25
    $region24: #{tpu_custom_call.1} parent=1 // pred_region
      %45 = dma.done [#allocation5], 2048
    $region25: #{tpu_custom_call.1} parent=1 // pred_fallthru
      _
    // Predicated region
    $region26: #{tpu_custom_call.1} parent=1 // pred_check
      _
    $region27: #{tpu_custom_call.1} parent=1 // pred_check_branch
      %47 = sbr.rel (0) target = $region29
    $region28: #{tpu_custom_call.1} parent=1 // pred_region
      %48 = dma.done [#allocation8], 512
    $region29: #{tpu_custom_call.1} parent=1 // pred_fallthru
      _
    %v49 = vld [vmem:[%s0] sm:$0x3]
    %v50 = vld [vmem:[%s0 + $0x2] sm:$0x3]
    %v51 = vld [vmem:[%s0 + $0x4] sm:$0x3]
    %v52 = vld [vmem:[%s0 + $0x6] sm:$0x3]
    %v53 = vld [vmem:[%s0 + $0x8] sm:$0x3]
    %v54 = vld [vmem:[%s0 + $0xa] sm:$0x3]
    %v55 = vld [vmem:[%s0 + $0xc] sm:$0x3]
    %v56 = vld [vmem:[%s0 + $0xe] sm:$0x3]
    %v57 = vld [vmem:[%s1] ss:$2 sm:$0xf]
    %s58 = scalar_lea.vmem %s1, 1
    %v59 = vld [vmem:[%s58] ss:$2 sm:$0xf]
    %vm60 = vcmp.gt.f32.partialorder %v49, 0.5
    %vm61 = vcmp.gt.f32.partialorder %v50, 0.5
    %vm62 = vcmp.gt.f32.partialorder %v51, 0.5
    %vm63 = vcmp.gt.f32.partialorder %v52, 0.5
    %vm64 = vcmp.gt.f32.partialorder %v53, 0.5
    %vm65 = vcmp.gt.f32.partialorder %v54, 0.5
    %vm66 = vcmp.gt.f32.partialorder %v55, 0.5
    %vm67 = vcmp.gt.f32.partialorder %v56, 0.5
    %v68 = vsel %vm60, 1, 0
    %v69 = vsel %vm61, 1, 0
    %v70 = vsel %vm62, 1, 0
    %v71 = vsel %vm63, 1, 0
    %v72 = vsel %vm64, 1, 0
    %v73 = vsel %vm65, 1, 0
    %v74 = vsel %vm66, 1, 0
    %v75 = vsel %vm67, 1, 0
    %76 = vset.pattern.permute.xlu0 0
    %77 = vperm.xlu0 %76, %v68
    %v78 = vpop.permute.xlu0 %77
    %79 = vset.pattern.permute.xlu0 0
    %80 = vperm.xlu0 %79, %v69
    %v81 = vpop.permute.xlu0 %80
    %82 = vset.pattern.permute.xlu0 0
    %83 = vperm.xlu0 %82, %v70
    %v84 = vpop.permute.xlu0 %83
    %85 = vset.pattern.permute.xlu0 0
    %86 = vperm.xlu0 %85, %v71
    %v87 = vpop.permute.xlu0 %86
    %88 = vset.pattern.permute.xlu0 0
    %89 = vperm.xlu0 %88, %v72
    %v90 = vpop.permute.xlu0 %89
    %91 = vset.pattern.permute.xlu0 0
    %92 = vperm.xlu0 %91, %v73
    %v93 = vpop.permute.xlu0 %92
    %94 = vset.pattern.permute.xlu0 0
    %95 = vperm.xlu0 %94, %v74
    %v96 = vpop.permute.xlu0 %95
    %97 = vset.pattern.permute.xlu0 0
    %98 = vperm.xlu0 %97, %v75
    %v99 = vpop.permute.xlu0 %98
    %vm100 = vcmp.eq.s32.totalorder %v78, 1
    %vm101 = vcmp.eq.s32.totalorder %v81, 1
    %vm102 = vcmp.eq.s32.totalorder %v84, 1
    %vm103 = vcmp.eq.s32.totalorder %v87, 1
    %vm104 = vcmp.eq.s32.totalorder %v90, 1
    %vm105 = vcmp.eq.s32.totalorder %v93, 1
    %vm106 = vcmp.eq.s32.totalorder %v96, 1
    %vm107 = vcmp.eq.s32.totalorder %v99, 1
    %v109 = vlaneseq
    %v110 = vshrl.u32 %v109, 7
    %v111 = vsub.s32 0, %v110
    %v112 = vrot.slane %v59, %v111
    %v113 = vlaneseq
    %v114 = vshrl.u32 %v113, 7
    %v115 = vsub.s32 1, %v114
    %v116 = vrot.slane %v59, %v115
    %v117 = vlaneseq
    %v118 = vshrl.u32 %v117, 7
    %v119 = vsub.s32 2, %v118
    %v120 = vrot.slane %v59, %v119
    %v121 = vlaneseq
    %v122 = vshrl.u32 %v121, 7
    %v123 = vsub.s32 3, %v122
    %v124 = vrot.slane %v59, %v123
    %v130 = vlaneseq
    %v131 = vshrl.u32 %v130, 7
    %v132 = vsub.s32 0, %v131
    %v133 = vrot.slane %v57, %v132
    %v134 = vlaneseq
    %v135 = vshrl.u32 %v134, 7
    %v136 = vsub.s32 1, %v135
    %v137 = vrot.slane %v57, %v136
    %v138 = vlaneseq
    %v139 = vshrl.u32 %v138, 7
    %v140 = vsub.s32 2, %v139
    %v141 = vrot.slane %v57, %v140
    %v142 = vlaneseq
    %v143 = vshrl.u32 %v142, 7
    %v144 = vsub.s32 3, %v143
    %v145 = vrot.slane %v57, %v144
    %v150 = vsel %vm100, %v112, %v133
    %v151 = vsel %vm100, %v116, %v137
    %v152 = vsel %vm100, %v120, %v141
    %v153 = vsel %vm100, %v124, %v145
    %v154 = vsel %vm101, %v112, %v133
    %v155 = vsel %vm101, %v116, %v137
    %v156 = vsel %vm101, %v120, %v141
    %v157 = vsel %vm101, %v124, %v145
    %v158 = vsel %vm102, %v112, %v133
    %v159 = vsel %vm102, %v116, %v137
    %v160 = vsel %vm102, %v120, %v141
    %v161 = vsel %vm102, %v124, %v145
    %v162 = vsel %vm103, %v112, %v133
    %v163 = vsel %vm103, %v116, %v137
    %v164 = vsel %vm103, %v120, %v141
    %v165 = vsel %vm103, %v124, %v145
    %v166 = vsel %vm104, %v112, %v133
    %v167 = vsel %vm104, %v116, %v137
    %v168 = vsel %vm104, %v120, %v141
    %v169 = vsel %vm104, %v124, %v145
    %v170 = vsel %vm105, %v112, %v133
    %v171 = vsel %vm105, %v116, %v137
    %v172 = vsel %vm105, %v120, %v141
    %v173 = vsel %vm105, %v124, %v145
    %v174 = vsel %vm106, %v112, %v133
    %v175 = vsel %vm106, %v116, %v137
    %v176 = vsel %vm106, %v120, %v141
    %v177 = vsel %vm106, %v124, %v145
    %v178 = vsel %vm107, %v112, %v133
    %v179 = vsel %vm107, %v116, %v137
    %v180 = vsel %vm107, %v120, %v141
    %v181 = vsel %vm107, %v124, %v145
    %v214 = vcombine.low %v150, %v151
    %v215 = vcombine.low %v152, %v153
    %v217 = vunpack.c.l.s4 1983009808
    %v218 = vunpack.c.0.s8 %v217
    %v219 = vlaneseq
    %v220 = vshrl.u32 %v219, 7
    %v221 = vsub.s32 %v218, %v220
    %v222 = vrot.slane %v214, %v221
    %v224 = vunpack.c.l.s4 1983009808
    %v225 = vunpack.c.0.s8 %v224
    %v226 = vlaneseq
    %v227 = vshrl.u32 %v226, 7
    %v228 = vsub.s32 %v225, %v227
    %v229 = vrot.slane %v215, %v228
    %v230 = vcombine.low %v222, %v229
    %v231 = vcombine.low %v154, %v155
    %v232 = vcombine.low %v156, %v157
    %v234 = vunpack.c.l.s4 1983009808
    %v235 = vunpack.c.0.s8 %v234
    %v236 = vlaneseq
    %v237 = vshrl.u32 %v236, 7
    %v238 = vsub.s32 %v235, %v237
    %v239 = vrot.slane %v231, %v238
    %v241 = vunpack.c.l.s4 1983009808
    %v242 = vunpack.c.0.s8 %v241
    %v243 = vlaneseq
    %v244 = vshrl.u32 %v243, 7
    %v245 = vsub.s32 %v242, %v244
    %v246 = vrot.slane %v232, %v245
    %v247 = vcombine.low %v239, %v246
    %v248 = vcombine.low %v158, %v159
    %v249 = vcombine.low %v160, %v161
    %v251 = vunpack.c.l.s4 1983009808
    %v252 = vunpack.c.0.s8 %v251
    %v253 = vlaneseq
    %v254 = vshrl.u32 %v253, 7
    %v255 = vsub.s32 %v252, %v254
    %v256 = vrot.slane %v248, %v255
    %v258 = vunpack.c.l.s4 1983009808
    %v259 = vunpack.c.0.s8 %v258
    %v260 = vlaneseq
    %v261 = vshrl.u32 %v260, 7
    %v262 = vsub.s32 %v259, %v261
    %v263 = vrot.slane %v249, %v262
    %v264 = vcombine.low %v256, %v263
    %v265 = vcombine.low %v162, %v163
    %v266 = vcombine.low %v164, %v165
    %v268 = vunpack.c.l.s4 1983009808
    %v269 = vunpack.c.0.s8 %v268
    %v270 = vlaneseq
    %v271 = vshrl.u32 %v270, 7
    %v272 = vsub.s32 %v269, %v271
    %v273 = vrot.slane %v265, %v272
    %v275 = vunpack.c.l.s4 1983009808
    %v276 = vunpack.c.0.s8 %v275
    %v277 = vlaneseq
    %v278 = vshrl.u32 %v277, 7
    %v279 = vsub.s32 %v276, %v278
    %v280 = vrot.slane %v266, %v279
    %v281 = vcombine.low %v273, %v280
    %v282 = vcombine.low %v166, %v167
    %v283 = vcombine.low %v168, %v169
    %v285 = vunpack.c.l.s4 1983009808
    %v286 = vunpack.c.0.s8 %v285
    %v287 = vlaneseq
    %v288 = vshrl.u32 %v287, 7
    %v289 = vsub.s32 %v286, %v288
    %v290 = vrot.slane %v282, %v289
    %v292 = vunpack.c.l.s4 1983009808
    %v293 = vunpack.c.0.s8 %v292
    %v294 = vlaneseq
    %v295 = vshrl.u32 %v294, 7
    %v296 = vsub.s32 %v293, %v295
    %v297 = vrot.slane %v283, %v296
    %v298 = vcombine.low %v290, %v297
    %v299 = vcombine.low %v170, %v171
    %v300 = vcombine.low %v172, %v173
    %v302 = vunpack.c.l.s4 1983009808
    %v303 = vunpack.c.0.s8 %v302
    %v304 = vlaneseq
    %v305 = vshrl.u32 %v304, 7
    %v306 = vsub.s32 %v303, %v305
    %v307 = vrot.slane %v299, %v306
    %v309 = vunpack.c.l.s4 1983009808
    %v310 = vunpack.c.0.s8 %v309
    %v311 = vlaneseq
    %v312 = vshrl.u32 %v311, 7
    %v313 = vsub.s32 %v310, %v312
    %v314 = vrot.slane %v300, %v313
    %v315 = vcombine.low %v307, %v314
    %v316 = vcombine.low %v174, %v175
    %v317 = vcombine.low %v176, %v177
    %v319 = vunpack.c.l.s4 1983009808
    %v320 = vunpack.c.0.s8 %v319
    %v321 = vlaneseq
    %v322 = vshrl.u32 %v321, 7
    %v323 = vsub.s32 %v320, %v322
    %v324 = vrot.slane %v316, %v323
    %v326 = vunpack.c.l.s4 1983009808
    %v327 = vunpack.c.0.s8 %v326
    %v328 = vlaneseq
    %v329 = vshrl.u32 %v328, 7
    %v330 = vsub.s32 %v327, %v329
    %v331 = vrot.slane %v317, %v330
    %v332 = vcombine.low %v324, %v331
    %v333 = vcombine.low %v178, %v179
    %v334 = vcombine.low %v180, %v181
    %v336 = vunpack.c.l.s4 1983009808
    %v337 = vunpack.c.0.s8 %v336
    %v338 = vlaneseq
    %v339 = vshrl.u32 %v338, 7
    %v340 = vsub.s32 %v337, %v339
    %v341 = vrot.slane %v333, %v340
    %v343 = vunpack.c.l.s4 1983009808
    %v344 = vunpack.c.0.s8 %v343
    %v345 = vlaneseq
    %v346 = vshrl.u32 %v345, 7
    %v347 = vsub.s32 %v344, %v346
    %v348 = vrot.slane %v334, %v347
    %v349 = vcombine.low %v341, %v348
    %358 = vst [vmem:[#allocation2] sm:$0xff] %v230
    %359 = vst [vmem:[#allocation2 + $0x8] sm:$0xff] %v247
    %360 = vst [vmem:[#allocation2 + $0x10] sm:$0xff] %v264
    %361 = vst [vmem:[#allocation2 + $0x18] sm:$0xff] %v281
    %362 = vst [vmem:[#allocation2 + $0x20] sm:$0xff] %v298
    %363 = vst [vmem:[#allocation2 + $0x28] sm:$0xff] %v315
    %364 = vst [vmem:[#allocation2 + $0x30] sm:$0xff] %v332
    %365 = vst [vmem:[#allocation2 + $0x38] sm:$0xff] %v349
    %v366 = vld [vmem:[#allocation4] sm:$0xff]
    %v367 = vld [vmem:[#allocation4 + $0x8] sm:$0xff]
    %v368 = vld [vmem:[#allocation4 + $0x10] sm:$0xff]
    %v369 = vld [vmem:[#allocation4 + $0x18] sm:$0xff]
    %v370 = vld [vmem:[#allocation4 + $0x20] sm:$0xff]
    %v371 = vld [vmem:[#allocation4 + $0x28] sm:$0xff]
    %v372 = vld [vmem:[#allocation4 + $0x30] sm:$0xff]
    %v373 = vld [vmem:[#allocation4 + $0x38] sm:$0xff]
    %v374 = vld [vmem:[#allocation4 + $0x40] sm:$0xff]
    %v375 = vld [vmem:[#allocation4 + $0x48] sm:$0xff]
    %v376 = vld [vmem:[#allocation4 + $0x50] sm:$0xff]
    %v377 = vld [vmem:[#allocation4 + $0x58] sm:$0xff]
    %v378 = vld [vmem:[#allocation4 + $0x60] sm:$0xf]
    %v379 = vld [vmem:[#allocation4 + $0x68] sm:$0xf]
    %v380 = vld [vmem:[#allocation4 + $0x70] sm:$0xf]
    %v381 = vld [vmem:[#allocation4 + $0x78] sm:$0xf]
    %v382 = vld [vmem:[#allocation2] sm:$0xff]
    %vm383 = vcmask 228352
    %v385 = vsel %vm383, 0.0, 0
    %vm387 = vcmask 1043456
    %v389 = vsel %vm387, %v378, 0
    %v392 = vsel %vm387, %v379, 0
    %v395 = vsel %vm387, %v380, 0
    %v398 = vsel %vm387, %v381, 0
    %400 = vmatprep.subr.mxu0 0.0
    %401 = vmatpush1.msra.mxu0 0.0
    %402 = vmatprep.subr.mxu0 0.0
    %403 = vmatpush1.msra.mxu0 0.0
    %404 = vmatprep.subr.mxu0 0.0
    %405 = vmatpush1.msra.mxu0 0.0
    %406 = vmatprep.subr.mxu0 0.0
    %407 = vmatpush1.msra.mxu0 0.0
    %408 = vmatprep.subr.mxu0 0.0
    %409 = vmatpush1.msra.mxu0 0.0
    %410 = vmatprep.subr.mxu0 0.0
    %411 = vmatpush1.msra.mxu0 0.0
    %412 = vmatprep.subr.mxu0 0.0
    %413 = vmatpush1.msra.mxu0 0.0
    %414 = vmatprep.subr.mxu0 0.0
    %415 = vmatpush1.msra.mxu0 0.0
    %416 = vmatprep.subr.mxu0 0.0
    %417 = vmatpush1.msra.mxu0 0.0
    %418 = vmatprep.subr.mxu0 0.0
    %419 = vmatpush1.msra.mxu0 0.0
    %420 = vmatprep.subr.mxu0 0.0
    %421 = vmatpush1.msra.mxu0 0.0
    %422 = vmatprep.subr.mxu0 0.0
    %423 = vmatpush1.msra.mxu0 0.0
    %424 = vmatprep.subr.mxu0 %v392
    %425 = vmatpush1.msra.mxu0 %v389
    %426 = vmatprep.subr.mxu0 %v375
    %427 = vmatpush1.msra.mxu0 %v374
    %428 = vmatprep.subr.mxu0 %v371
    %429 = vmatpush1.msra.mxu0 %v370
    %430 = vmatprep.subr.mxu0 %v367
    %431 = vmatpush1.msra.mxu0 %v366
    %432 = vmatprep.subr.mxu0 0.0
    %433 = vmatpush2.msra.mxu0 0.0
    %434 = vmatprep.subr.mxu0 0.0
    %435 = vmatpush2.msra.mxu0 0.0
    %436 = vmatprep.subr.mxu0 0.0
    %437 = vmatpush2.msra.mxu0 0.0
    %438 = vmatprep.subr.mxu0 0.0
    %439 = vmatpush2.msra.mxu0 0.0
    %440 = vmatprep.subr.mxu0 0.0
    %441 = vmatpush2.msra.mxu0 0.0
    %442 = vmatprep.subr.mxu0 0.0
    %443 = vmatpush2.msra.mxu0 0.0
    %444 = vmatprep.subr.mxu0 0.0
    %445 = vmatpush2.msra.mxu0 0.0
    %446 = vmatprep.subr.mxu0 0.0
    %447 = vmatpush2.msra.mxu0 0.0
    %448 = vmatprep.subr.mxu0 0.0
    %449 = vmatpush2.msra.mxu0 0.0
    %450 = vmatprep.subr.mxu0 0.0
    %451 = vmatpush2.msra.mxu0 0.0
    %452 = vmatprep.subr.mxu0 0.0
    %453 = vmatpush2.msra.mxu0 0.0
    %454 = vmatprep.subr.mxu0 0.0
    %455 = vmatpush2.msra.mxu0 0.0
    %456 = vmatprep.subr.mxu0 0.0
    %457 = vmatpush2.msra.mxu0 0.0
    %458 = vmatprep.subr.mxu0 0.0
    %459 = vmatpush2.msra.mxu0 0.0
    %460 = vmatprep.subr.mxu0 0.0
    %461 = vmatpush2.msra.mxu0 0.0
    %462 = vmatprep.subr.mxu0 0.0
    %463 = vmatpush2.msra.mxu0 0.0
    %464 = vmatprep.mubr.f32.mxu0 0.0
    %465 = vmatmul.mubr.f32.gmra.mxu0 %v385
    %v466 = vpop.f32.mrf.mxu0
    %v467 = vadd.f32 0.0, %v466
    %v468 = vpop.f32.mrf.mxu0
    %v469 = vadd.f32 0.0, %v468
    %470 = vdwg.mxu0
    %471 = vmatprep.subr.mxu0 0.0
    %472 = vmatpush1.msra.mxu0 0.0
    %473 = vmatprep.subr.mxu0 0.0
    %474 = vmatpush1.msra.mxu0 0.0
    %475 = vmatprep.subr.mxu0 0.0
    %476 = vmatpush1.msra.mxu0 0.0
    %477 = vmatprep.subr.mxu0 0.0
    %478 = vmatpush1.msra.mxu0 0.0
    %479 = vmatprep.subr.mxu0 0.0
    %480 = vmatpush1.msra.mxu0 0.0
    %481 = vmatprep.subr.mxu0 0.0
    %482 = vmatpush1.msra.mxu0 0.0
    %483 = vmatprep.subr.mxu0 0.0
    %484 = vmatpush1.msra.mxu0 0.0
    %485 = vmatprep.subr.mxu0 0.0
    %486 = vmatpush1.msra.mxu0 0.0
    %487 = vmatprep.subr.mxu0 0.0
    %488 = vmatpush1.msra.mxu0 0.0
    %489 = vmatprep.subr.mxu0 0.0
    %490 = vmatpush1.msra.mxu0 0.0
    %491 = vmatprep.subr.mxu0 0.0
    %492 = vmatpush1.msra.mxu0 0.0
    %493 = vmatprep.subr.mxu0 0.0
    %494 = vmatpush1.msra.mxu0 0.0
    %495 = vmatprep.subr.mxu0 %v398
    %496 = vmatpush1.msra.mxu0 %v395
    %497 = vmatprep.subr.mxu0 %v377
    %498 = vmatpush1.msra.mxu0 %v376
    %499 = vmatprep.subr.mxu0 %v373
    %500 = vmatpush1.msra.mxu0 %v372
    %501 = vmatprep.subr.mxu0 %v369
    %502 = vmatpush1.msra.mxu0 %v368
    %503 = vmatprep.subr.mxu0 0.0
    %504 = vmatpush2.msra.mxu0 0.0
    %505 = vmatprep.subr.mxu0 0.0
    %506 = vmatpush2.msra.mxu0 0.0
    %507 = vmatprep.subr.mxu0 0.0
    %508 = vmatpush2.msra.mxu0 0.0
    %509 = vmatprep.subr.mxu0 0.0
    %510 = vmatpush2.msra.mxu0 0.0
    %511 = vmatprep.subr.mxu0 0.0
    %512 = vmatpush2.msra.mxu0 0.0
    %513 = vmatprep.subr.mxu0 0.0
    %514 = vmatpush2.msra.mxu0 0.0
    %515 = vmatprep.subr.mxu0 0.0
    %516 = vmatpush2.msra.mxu0 0.0
    %517 = vmatprep.subr.mxu0 0.0
    %518 = vmatpush2.msra.mxu0 0.0
    %519 = vmatprep.subr.mxu0 0.0
    %520 = vmatpush2.msra.mxu0 0.0
    %521 = vmatprep.subr.mxu0 0.0
    %522 = vmatpush2.msra.mxu0 0.0
    %523 = vmatprep.subr.mxu0 0.0
    %524 = vmatpush2.msra.mxu0 0.0
    %525 = vmatprep.subr.mxu0 0.0
    %526 = vmatpush2.msra.mxu0 0.0
    %527 = vmatprep.subr.mxu0 0.0
    %528 = vmatpush2.msra.mxu0 0.0
    %529 = vmatprep.subr.mxu0 0.0
    %530 = vmatpush2.msra.mxu0 0.0
    %531 = vmatprep.subr.mxu0 0.0
    %532 = vmatpush2.msra.mxu0 0.0
    %533 = vmatprep.subr.mxu0 0.0
    %534 = vmatpush2.msra.mxu0 0.0
    %535 = vmatprep.mubr.f32.mxu0 0.0
    %536 = vmatmul.mubr.f32.gmra.mxu0 %v385
    %v537 = vpop.f32.mrf.mxu0
    %v538 = vadd.f32 0.0, %v537
    %v539 = vpop.f32.mrf.mxu0
    %v540 = vadd.f32 0.0, %v539
    %541 = vdwg.mxu0
    %v546 = vcombine.low %v467, %v469
    %v547 = vcombine.low %v538, %v540
    %v549 = vunpack.c.l.s4 1983009808
    %v550 = vunpack.c.0.s8 %v549
    %v551 = vlaneseq
    %v552 = vshrl.u32 %v551, 7
    %v553 = vsub.s32 %v550, %v552
    %v554 = vrot.slane %v546, %v553
    %v556 = vunpack.c.l.s4 1983009808
    %v557 = vunpack.c.0.s8 %v556
    %v558 = vlaneseq
    %v559 = vshrl.u32 %v558, 7
    %v560 = vsub.s32 %v557, %v559
    %v561 = vrot.slane %v547, %v560
    %v562 = vcombine.low %v554, %v561
    %v564 = vadd.f32 %v382, %v562
    %v565 = vxor.u32 %v564, 2147483648
    %v566 = vmul.f32 %v565, 1.442695
    %v567 = vpow.pop %v566
    %v568 = vadd.f32 %v567, 1.0
    %v569 = vrcp.pop %v568
    %v570 = vmul.f32 1.0, %v569
    %v572 = vrot.slane %v564, 2
    %v574 = vxor.u32 %v572, 2147483648
    %v575 = vmul.f32 %v574, 1.442695
    %v576 = vpow.pop %v575
    %v577 = vadd.f32 %v576, 1.0
    %v578 = vrcp.pop %v577
    %v579 = vmul.f32 1.0, %v578
    %v580 = vrot.slane %v564, 4
    %v582 = vtanh.pop %v580
    %v583 = vrot.slane %v564, 6
    %v585 = vxor.u32 %v583, 2147483648
    %v586 = vmul.f32 %v585, 1.442695
    %v587 = vpow.pop %v586
    %v588 = vadd.f32 %v587, 1.0
    %v589 = vrcp.pop %v588
    %v590 = vmul.f32 1.0, %v589
    %v591 = vmul.f32 %v579, 0.0
    %v592 = vmul.f32 %v570, %v582
    %v593 = vadd.f32 %v591, %v592
    %v594 = vtanh.pop %v593
    %v595 = vmul.f32 %v590, %v594
    %vm596 = vcmask 222208
    %v597 = vsel %vm596, %v595, 0.0
    %v598 = vrot.slane %v597, 4
    %v599 = vadd.f32 %v597, %v598
    %v600 = vrot.slane %v599, 2
    %v601 = vadd.f32 %v599, %v600
    %v602 = vrot.slane %v601, 1
    %v603 = vadd.f32 %v601, %v602
    %vm604 = vcmask 221184
    %605 = vst.msk [vmem:[#allocation3] sm:$0x1] %vm604, %v603
    %s606 = scalar_lea.vmem [#allocation2], 8
    %v607 = vld [vmem:[%s606] sm:$0xff]
    %v609 = vsel %vm383, %v595, 0
    %611 = vmatprep.subr.mxu0 0.0
    %612 = vmatpush1.msra.mxu0 0.0
    %613 = vmatprep.subr.mxu0 0.0
    %614 = vmatpush1.msra.mxu0 0.0
    %615 = vmatprep.subr.mxu0 0.0
    %616 = vmatpush1.msra.mxu0 0.0
    %617 = vmatprep.subr.mxu0 0.0
    %618 = vmatpush1.msra.mxu0 0.0
    %619 = vmatprep.subr.mxu0 0.0
    %620 = vmatpush1.msra.mxu0 0.0
    %621 = vmatprep.subr.mxu0 0.0
    %622 = vmatpush1.msra.mxu0 0.0
    %623 = vmatprep.subr.mxu0 0.0
    %624 = vmatpush1.msra.mxu0 0.0
    %625 = vmatprep.subr.mxu0 0.0
    %626 = vmatpush1.msra.mxu0 0.0
    %627 = vmatprep.subr.mxu0 0.0
    %628 = vmatpush1.msra.mxu0 0.0
    %629 = vmatprep.subr.mxu0 0.0
    %630 = vmatpush1.msra.mxu0 0.0
    %631 = vmatprep.subr.mxu0 0.0
    %632 = vmatpush1.msra.mxu0 0.0
    %633 = vmatprep.subr.mxu0 0.0
    %634 = vmatpush1.msra.mxu0 0.0
    %635 = vmatprep.subr.mxu0 %v392
    %636 = vmatpush1.msra.mxu0 %v389
    %637 = vmatprep.subr.mxu0 %v375
    %638 = vmatpush1.msra.mxu0 %v374
    %639 = vmatprep.subr.mxu0 %v371
    %640 = vmatpush1.msra.mxu0 %v370
    %641 = vmatprep.subr.mxu0 %v367
    %642 = vmatpush1.msra.mxu0 %v366
    %643 = vmatprep.subr.mxu0 0.0
    %644 = vmatpush2.msra.mxu0 0.0
    %645 = vmatprep.subr.mxu0 0.0
    %646 = vmatpush2.msra.mxu0 0.0
    %647 = vmatprep.subr.mxu0 0.0
    %648 = vmatpush2.msra.mxu0 0.0
    %649 = vmatprep.subr.mxu0 0.0
    %650 = vmatpush2.msra.mxu0 0.0
    %651 = vmatprep.subr.mxu0 0.0
    %652 = vmatpush2.msra.mxu0 0.0
    %653 = vmatprep.subr.mxu0 0.0
    %654 = vmatpush2.msra.mxu0 0.0
    %655 = vmatprep.subr.mxu0 0.0
    %656 = vmatpush2.msra.mxu0 0.0
    %657 = vmatprep.subr.mxu0 0.0
    %658 = vmatpush2.msra.mxu0 0.0
    %659 = vmatprep.subr.mxu0 0.0
    %660 = vmatpush2.msra.mxu0 0.0
    %661 = vmatprep.subr.mxu0 0.0
    %662 = vmatpush2.msra.mxu0 0.0
    %663 = vmatprep.subr.mxu0 0.0
    %664 = vmatpush2.msra.mxu0 0.0
    %665 = vmatprep.subr.mxu0 0.0
    %666 = vmatpush2.msra.mxu0 0.0
    %667 = vmatprep.subr.mxu0 0.0
    %668 = vmatpush2.msra.mxu0 0.0
    %669 = vmatprep.subr.mxu0 0.0
    %670 = vmatpush2.msra.mxu0 0.0
    %671 = vmatprep.subr.mxu0 0.0
    %672 = vmatpush2.msra.mxu0 0.0
    %673 = vmatprep.subr.mxu0 0.0
    %674 = vmatpush2.msra.mxu0 0.0
    %675 = vmatprep.mubr.f32.mxu0 0.0
    %676 = vmatmul.mubr.f32.gmra.mxu0 %v609
    %v677 = vpop.f32.mrf.mxu0
    %v678 = vadd.f32 0.0, %v677
    %v679 = vpop.f32.mrf.mxu0
    %v680 = vadd.f32 0.0, %v679
    %681 = vdwg.mxu0
    %682 = vmatprep.subr.mxu0 0.0
    %683 = vmatpush1.msra.mxu0 0.0
    %684 = vmatprep.subr.mxu0 0.0
    %685 = vmatpush1.msra.mxu0 0.0
    %686 = vmatprep.subr.mxu0 0.0
    %687 = vmatpush1.msra.mxu0 0.0
    %688 = vmatprep.subr.mxu0 0.0
    %689 = vmatpush1.msra.mxu0 0.0
    %690 = vmatprep.subr.mxu0 0.0
    %691 = vmatpush1.msra.mxu0 0.0
    %692 = vmatprep.subr.mxu0 0.0
    %693 = vmatpush1.msra.mxu0 0.0
    %694 = vmatprep.subr.mxu0 0.0
    %695 = vmatpush1.msra.mxu0 0.0
    %696 = vmatprep.subr.mxu0 0.0
    %697 = vmatpush1.msra.mxu0 0.0
    %698 = vmatprep.subr.mxu0 0.0
    %699 = vmatpush1.msra.mxu0 0.0
    %700 = vmatprep.subr.mxu0 0.0
    %701 = vmatpush1.msra.mxu0 0.0
    %702 = vmatprep.subr.mxu0 0.0
    %703 = vmatpush1.msra.mxu0 0.0
    %704 = vmatprep.subr.mxu0 0.0
    %705 = vmatpush1.msra.mxu0 0.0
    %706 = vmatprep.subr.mxu0 %v398
    %707 = vmatpush1.msra.mxu0 %v395
    %708 = vmatprep.subr.mxu0 %v377
    %709 = vmatpush1.msra.mxu0 %v376
    %710 = vmatprep.subr.mxu0 %v373
    %711 = vmatpush1.msra.mxu0 %v372
    %712 = vmatprep.subr.mxu0 %v369
    %713 = vmatpush1.msra.mxu0 %v368
    %714 = vmatprep.subr.mxu0 0.0
    %715 = vmatpush2.msra.mxu0 0.0
    %716 = vmatprep.subr.mxu0 0.0
    %717 = vmatpush2.msra.mxu0 0.0
    %718 = vmatprep.subr.mxu0 0.0
    %719 = vmatpush2.msra.mxu0 0.0
    %720 = vmatprep.subr.mxu0 0.0
    %721 = vmatpush2.msra.mxu0 0.0
    %722 = vmatprep.subr.mxu0 0.0
    %723 = vmatpush2.msra.mxu0 0.0
    %724 = vmatprep.subr.mxu0 0.0
    %725 = vmatpush2.msra.mxu0 0.0
    %726 = vmatprep.subr.mxu0 0.0
    %727 = vmatpush2.msra.mxu0 0.0
    %728 = vmatprep.subr.mxu0 0.0
    %729 = vmatpush2.msra.mxu0 0.0
    %730 = vmatprep.subr.mxu0 0.0
    %731 = vmatpush2.msra.mxu0 0.0
    %732 = vmatprep.subr.mxu0 0.0
    %733 = vmatpush2.msra.mxu0 0.0
    %734 = vmatprep.subr.mxu0 0.0
    %735 = vmatpush2.msra.mxu0 0.0
    %736 = vmatprep.subr.mxu0 0.0
    %737 = vmatpush2.msra.mxu0 0.0
    %738 = vmatprep.subr.mxu0 0.0
    %739 = vmatpush2.msra.mxu0 0.0
    %740 = vmatprep.subr.mxu0 0.0
    %741 = vmatpush2.msra.mxu0 0.0
    %742 = vmatprep.subr.mxu0 0.0
    %743 = vmatpush2.msra.mxu0 0.0
    %744 = vmatprep.subr.mxu0 0.0
    %745 = vmatpush2.msra.mxu0 0.0
    %746 = vmatprep.mubr.f32.mxu0 0.0
    %747 = vmatmul.mubr.f32.gmra.mxu0 %v609
    %v748 = vpop.f32.mrf.mxu0
    %v749 = vadd.f32 0.0, %v748
    %v750 = vpop.f32.mrf.mxu0
    %v751 = vadd.f32 0.0, %v750
    %752 = vdwg.mxu0
    %v757 = vcombine.low %v678, %v680
    %v758 = vcombine.low %v749, %v751
    %v760 = vunpack.c.l.s4 1983009808
    %v761 = vunpack.c.0.s8 %v760
    %v762 = vlaneseq
    %v763 = vshrl.u32 %v762, 7
    %v764 = vsub.s32 %v761, %v763
    %v765 = vrot.slane %v757, %v764
    %v767 = vunpack.c.l.s4 1983009808
    %v768 = vunpack.c.0.s8 %v767
    %v769 = vlaneseq
    %v770 = vshrl.u32 %v769, 7
    %v771 = vsub.s32 %v768, %v770
    %v772 = vrot.slane %v758, %v771
    %v773 = vcombine.low %v765, %v772
    %v775 = vadd.f32 %v607, %v773
    %v776 = vxor.u32 %v775, 2147483648
    %v777 = vmul.f32 %v776, 1.442695
    %v778 = vpow.pop %v777
    %v779 = vadd.f32 %v778, 1.0
    %v780 = vrcp.pop %v779
    %v781 = vmul.f32 1.0, %v780
    %v783 = vrot.slane %v775, 2
    %v785 = vxor.u32 %v783, 2147483648
    %v786 = vmul.f32 %v785, 1.442695
    %v787 = vpow.pop %v786
    %v788 = vadd.f32 %v787, 1.0
    %v789 = vrcp.pop %v788
    %v790 = vmul.f32 1.0, %v789
    %v791 = vrot.slane %v775, 4
    %v793 = vtanh.pop %v791
    %v794 = vrot.slane %v775, 6
    %v796 = vxor.u32 %v794, 2147483648
    %v797 = vmul.f32 %v796, 1.442695
    %v798 = vpow.pop %v797
    %v799 = vadd.f32 %v798, 1.0
    %v800 = vrcp.pop %v799
    %v801 = vmul.f32 1.0, %v800
    %v802 = vmul.f32 %v790, %v593
    %v803 = vmul.f32 %v781, %v793
    %v804 = vadd.f32 %v802, %v803
    %v805 = vtanh.pop %v804
    %v806 = vmul.f32 %v801, %v805
    %v807 = vsel %vm596, %v806, 0.0
    %v808 = vrot.slane %v807, 4
    %v809 = vadd.f32 %v807, %v808
    %v810 = vrot.slane %v809, 2
    %v811 = vadd.f32 %v809, %v810
    %v812 = vrot.slane %v811, 1
    %v813 = vadd.f32 %v811, %v812
    %814 = vst.msk [vmem:[#allocation3 + $0x1] sm:$0x1] %vm604, %v813
    %s815 = scalar_lea.vmem [#allocation2], 16
    %v816 = vld [vmem:[%s815] sm:$0xff]
    %v818 = vsel %vm383, %v806, 0
    %820 = vmatprep.subr.mxu0 0.0
    %821 = vmatpush1.msra.mxu0 0.0
    %822 = vmatprep.subr.mxu0 0.0
    %823 = vmatpush1.msra.mxu0 0.0
    %824 = vmatprep.subr.mxu0 0.0
    %825 = vmatpush1.msra.mxu0 0.0
    %826 = vmatprep.subr.mxu0 0.0
    %827 = vmatpush1.msra.mxu0 0.0
    %828 = vmatprep.subr.mxu0 0.0
    %829 = vmatpush1.msra.mxu0 0.0
    %830 = vmatprep.subr.mxu0 0.0
    %831 = vmatpush1.msra.mxu0 0.0
    %832 = vmatprep.subr.mxu0 0.0
    %833 = vmatpush1.msra.mxu0 0.0
    %834 = vmatprep.subr.mxu0 0.0
    %835 = vmatpush1.msra.mxu0 0.0
    %836 = vmatprep.subr.mxu0 0.0
    %837 = vmatpush1.msra.mxu0 0.0
    %838 = vmatprep.subr.mxu0 0.0
    %839 = vmatpush1.msra.mxu0 0.0
    %840 = vmatprep.subr.mxu0 0.0
    %841 = vmatpush1.msra.mxu0 0.0
    %842 = vmatprep.subr.mxu0 0.0
    %843 = vmatpush1.msra.mxu0 0.0
    %844 = vmatprep.subr.mxu0 %v392
    %845 = vmatpush1.msra.mxu0 %v389
    %846 = vmatprep.subr.mxu0 %v375
    %847 = vmatpush1.msra.mxu0 %v374
    %848 = vmatprep.subr.mxu0 %v371
    %849 = vmatpush1.msra.mxu0 %v370
    %850 = vmatprep.subr.mxu0 %v367
    %851 = vmatpush1.msra.mxu0 %v366
    %852 = vmatprep.subr.mxu0 0.0
    %853 = vmatpush2.msra.mxu0 0.0
    %854 = vmatprep.subr.mxu0 0.0
    %855 = vmatpush2.msra.mxu0 0.0
    %856 = vmatprep.subr.mxu0 0.0
    %857 = vmatpush2.msra.mxu0 0.0
    %858 = vmatprep.subr.mxu0 0.0
    %859 = vmatpush2.msra.mxu0 0.0
    %860 = vmatprep.subr.mxu0 0.0
    %861 = vmatpush2.msra.mxu0 0.0
    %862 = vmatprep.subr.mxu0 0.0
    %863 = vmatpush2.msra.mxu0 0.0
    %864 = vmatprep.subr.mxu0 0.0
    %865 = vmatpush2.msra.mxu0 0.0
    %866 = vmatprep.subr.mxu0 0.0
    %867 = vmatpush2.msra.mxu0 0.0
    %868 = vmatprep.subr.mxu0 0.0
    %869 = vmatpush2.msra.mxu0 0.0
    %870 = vmatprep.subr.mxu0 0.0
    %871 = vmatpush2.msra.mxu0 0.0
    %872 = vmatprep.subr.mxu0 0.0
    %873 = vmatpush2.msra.mxu0 0.0
    %874 = vmatprep.subr.mxu0 0.0
    %875 = vmatpush2.msra.mxu0 0.0
    %876 = vmatprep.subr.mxu0 0.0
    %877 = vmatpush2.msra.mxu0 0.0
    %878 = vmatprep.subr.mxu0 0.0
    %879 = vmatpush2.msra.mxu0 0.0
    %880 = vmatprep.subr.mxu0 0.0
    %881 = vmatpush2.msra.mxu0 0.0
    %882 = vmatprep.subr.mxu0 0.0
    %883 = vmatpush2.msra.mxu0 0.0
    %884 = vmatprep.mubr.f32.mxu0 0.0
    %885 = vmatmul.mubr.f32.gmra.mxu0 %v818
    %v886 = vpop.f32.mrf.mxu0
    %v887 = vadd.f32 0.0, %v886
    %v888 = vpop.f32.mrf.mxu0
    %v889 = vadd.f32 0.0, %v888
    %890 = vdwg.mxu0
    %891 = vmatprep.subr.mxu0 0.0
    %892 = vmatpush1.msra.mxu0 0.0
    %893 = vmatprep.subr.mxu0 0.0
    %894 = vmatpush1.msra.mxu0 0.0
    %895 = vmatprep.subr.mxu0 0.0
    %896 = vmatpush1.msra.mxu0 0.0
    %897 = vmatprep.subr.mxu0 0.0
    %898 = vmatpush1.msra.mxu0 0.0
    %899 = vmatprep.subr.mxu0 0.0
    %900 = vmatpush1.msra.mxu0 0.0
    %901 = vmatprep.subr.mxu0 0.0
    %902 = vmatpush1.msra.mxu0 0.0
    %903 = vmatprep.subr.mxu0 0.0
    %904 = vmatpush1.msra.mxu0 0.0
    %905 = vmatprep.subr.mxu0 0.0
    %906 = vmatpush1.msra.mxu0 0.0
    %907 = vmatprep.subr.mxu0 0.0
    %908 = vmatpush1.msra.mxu0 0.0
    %909 = vmatprep.subr.mxu0 0.0
    %910 = vmatpush1.msra.mxu0 0.0
    %911 = vmatprep.subr.mxu0 0.0
    %912 = vmatpush1.msra.mxu0 0.0
    %913 = vmatprep.subr.mxu0 0.0
    %914 = vmatpush1.msra.mxu0 0.0
    %915 = vmatprep.subr.mxu0 %v398
    %916 = vmatpush1.msra.mxu0 %v395
    %917 = vmatprep.subr.mxu0 %v377
    %918 = vmatpush1.msra.mxu0 %v376
    %919 = vmatprep.subr.mxu0 %v373
    %920 = vmatpush1.msra.mxu0 %v372
    %921 = vmatprep.subr.mxu0 %v369
    %922 = vmatpush1.msra.mxu0 %v368
    %923 = vmatprep.subr.mxu0 0.0
    %924 = vmatpush2.msra.mxu0 0.0
    %925 = vmatprep.subr.mxu0 0.0
    %926 = vmatpush2.msra.mxu0 0.0
    %927 = vmatprep.subr.mxu0 0.0
    %928 = vmatpush2.msra.mxu0 0.0
    %929 = vmatprep.subr.mxu0 0.0
    %930 = vmatpush2.msra.mxu0 0.0
    %931 = vmatprep.subr.mxu0 0.0
    %932 = vmatpush2.msra.mxu0 0.0
    %933 = vmatprep.subr.mxu0 0.0
    %934 = vmatpush2.msra.mxu0 0.0
    %935 = vmatprep.subr.mxu0 0.0
    %936 = vmatpush2.msra.mxu0 0.0
    %937 = vmatprep.subr.mxu0 0.0
    %938 = vmatpush2.msra.mxu0 0.0
    %939 = vmatprep.subr.mxu0 0.0
    %940 = vmatpush2.msra.mxu0 0.0
    %941 = vmatprep.subr.mxu0 0.0
    %942 = vmatpush2.msra.mxu0 0.0
    %943 = vmatprep.subr.mxu0 0.0
    %944 = vmatpush2.msra.mxu0 0.0
    %945 = vmatprep.subr.mxu0 0.0
    %946 = vmatpush2.msra.mxu0 0.0
    %947 = vmatprep.subr.mxu0 0.0
    %948 = vmatpush2.msra.mxu0 0.0
    %949 = vmatprep.subr.mxu0 0.0
    %950 = vmatpush2.msra.mxu0 0.0
    %951 = vmatprep.subr.mxu0 0.0
    %952 = vmatpush2.msra.mxu0 0.0
    %953 = vmatprep.subr.mxu0 0.0
    %954 = vmatpush2.msra.mxu0 0.0
    %955 = vmatprep.mubr.f32.mxu0 0.0
    %956 = vmatmul.mubr.f32.gmra.mxu0 %v818
    %v957 = vpop.f32.mrf.mxu0
    %v958 = vadd.f32 0.0, %v957
    %v959 = vpop.f32.mrf.mxu0
    %v960 = vadd.f32 0.0, %v959
    %961 = vdwg.mxu0
    %v966 = vcombine.low %v887, %v889
    %v967 = vcombine.low %v958, %v960
    %v969 = vunpack.c.l.s4 1983009808
    %v970 = vunpack.c.0.s8 %v969
    %v971 = vlaneseq
    %v972 = vshrl.u32 %v971, 7
    %v973 = vsub.s32 %v970, %v972
    %v974 = vrot.slane %v966, %v973
    %v976 = vunpack.c.l.s4 1983009808
    %v977 = vunpack.c.0.s8 %v976
    %v978 = vlaneseq
    %v979 = vshrl.u32 %v978, 7
    %v980 = vsub.s32 %v977, %v979
    %v981 = vrot.slane %v967, %v980
    %v982 = vcombine.low %v974, %v981
    %v984 = vadd.f32 %v816, %v982
    %v985 = vxor.u32 %v984, 2147483648
    %v986 = vmul.f32 %v985, 1.442695
    %v987 = vpow.pop %v986
    %v988 = vadd.f32 %v987, 1.0
    %v989 = vrcp.pop %v988
    %v990 = vmul.f32 1.0, %v989
    %v992 = vrot.slane %v984, 2
    %v994 = vxor.u32 %v992, 2147483648
    %v995 = vmul.f32 %v994, 1.442695
    %v996 = vpow.pop %v995
    %v997 = vadd.f32 %v996, 1.0
    %v998 = vrcp.pop %v997
    %v999 = vmul.f32 1.0, %v998
    %v1000 = vrot.slane %v984, 4
    %v1002 = vtanh.pop %v1000
    %v1003 = vrot.slane %v984, 6
    %v1005 = vxor.u32 %v1003, 2147483648
    %v1006 = vmul.f32 %v1005, 1.442695
    %v1007 = vpow.pop %v1006
    %v1008 = vadd.f32 %v1007, 1.0
    %v1009 = vrcp.pop %v1008
    %v1010 = vmul.f32 1.0, %v1009
    %v1011 = vmul.f32 %v999, %v804
    %v1012 = vmul.f32 %v990, %v1002
    %v1013 = vadd.f32 %v1011, %v1012
    %v1014 = vtanh.pop %v1013
    %v1015 = vmul.f32 %v1010, %v1014
    %v1016 = vsel %vm596, %v1015, 0.0
    %v1017 = vrot.slane %v1016, 4
    %v1018 = vadd.f32 %v1016, %v1017
    %v1019 = vrot.slane %v1018, 2
    %v1020 = vadd.f32 %v1018, %v1019
    %v1021 = vrot.slane %v1020, 1
    %v1022 = vadd.f32 %v1020, %v1021
    %1023 = vst.msk [vmem:[#allocation3 + $0x2] sm:$0x1] %vm604, %v1022
    %s1024 = scalar_lea.vmem [#allocation2], 24
    %v1025 = vld [vmem:[%s1024] sm:$0xff]
    %v1027 = vsel %vm383, %v1015, 0
    %1029 = vmatprep.subr.mxu0 0.0
    %1030 = vmatpush1.msra.mxu0 0.0
    %1031 = vmatprep.subr.mxu0 0.0
    %1032 = vmatpush1.msra.mxu0 0.0
    %1033 = vmatprep.subr.mxu0 0.0
    %1034 = vmatpush1.msra.mxu0 0.0
    %1035 = vmatprep.subr.mxu0 0.0
    %1036 = vmatpush1.msra.mxu0 0.0
    %1037 = vmatprep.subr.mxu0 0.0
    %1038 = vmatpush1.msra.mxu0 0.0
    %1039 = vmatprep.subr.mxu0 0.0
    %1040 = vmatpush1.msra.mxu0 0.0
    %1041 = vmatprep.subr.mxu0 0.0
    %1042 = vmatpush1.msra.mxu0 0.0
    %1043 = vmatprep.subr.mxu0 0.0
    %1044 = vmatpush1.msra.mxu0 0.0
    %1045 = vmatprep.subr.mxu0 0.0
    %1046 = vmatpush1.msra.mxu0 0.0
    %1047 = vmatprep.subr.mxu0 0.0
    %1048 = vmatpush1.msra.mxu0 0.0
    %1049 = vmatprep.subr.mxu0 0.0
    %1050 = vmatpush1.msra.mxu0 0.0
    %1051 = vmatprep.subr.mxu0 0.0
    %1052 = vmatpush1.msra.mxu0 0.0
    %1053 = vmatprep.subr.mxu0 %v392
    %1054 = vmatpush1.msra.mxu0 %v389
    %1055 = vmatprep.subr.mxu0 %v375
    %1056 = vmatpush1.msra.mxu0 %v374
    %1057 = vmatprep.subr.mxu0 %v371
    %1058 = vmatpush1.msra.mxu0 %v370
    %1059 = vmatprep.subr.mxu0 %v367
    %1060 = vmatpush1.msra.mxu0 %v366
    %1061 = vmatprep.subr.mxu0 0.0
    %1062 = vmatpush2.msra.mxu0 0.0
    %1063 = vmatprep.subr.mxu0 0.0
    %1064 = vmatpush2.msra.mxu0 0.0
    %1065 = vmatprep.subr.mxu0 0.0
    %1066 = vmatpush2.msra.mxu0 0.0
    %1067 = vmatprep.subr.mxu0 0.0
    %1068 = vmatpush2.msra.mxu0 0.0
    %1069 = vmatprep.subr.mxu0 0.0
    %1070 = vmatpush2.msra.mxu0 0.0
    %1071 = vmatprep.subr.mxu0 0.0
    %1072 = vmatpush2.msra.mxu0 0.0
    %1073 = vmatprep.subr.mxu0 0.0
    %1074 = vmatpush2.msra.mxu0 0.0
    %1075 = vmatprep.subr.mxu0 0.0
    %1076 = vmatpush2.msra.mxu0 0.0
    %1077 = vmatprep.subr.mxu0 0.0
    %1078 = vmatpush2.msra.mxu0 0.0
    %1079 = vmatprep.subr.mxu0 0.0
    %1080 = vmatpush2.msra.mxu0 0.0
    %1081 = vmatprep.subr.mxu0 0.0
    %1082 = vmatpush2.msra.mxu0 0.0
    %1083 = vmatprep.subr.mxu0 0.0
    %1084 = vmatpush2.msra.mxu0 0.0
    %1085 = vmatprep.subr.mxu0 0.0
    %1086 = vmatpush2.msra.mxu0 0.0
    %1087 = vmatprep.subr.mxu0 0.0
    %1088 = vmatpush2.msra.mxu0 0.0
    %1089 = vmatprep.subr.mxu0 0.0
    %1090 = vmatpush2.msra.mxu0 0.0
    %1091 = vmatprep.subr.mxu0 0.0
    %1092 = vmatpush2.msra.mxu0 0.0
    %1093 = vmatprep.mubr.f32.mxu0 0.0
    %1094 = vmatmul.mubr.f32.gmra.mxu0 %v1027
    %v1095 = vpop.f32.mrf.mxu0
    %v1096 = vadd.f32 0.0, %v1095
    %v1097 = vpop.f32.mrf.mxu0
    %v1098 = vadd.f32 0.0, %v1097
    %1099 = vdwg.mxu0
    %1100 = vmatprep.subr.mxu0 0.0
    %1101 = vmatpush1.msra.mxu0 0.0
    %1102 = vmatprep.subr.mxu0 0.0
    %1103 = vmatpush1.msra.mxu0 0.0
    %1104 = vmatprep.subr.mxu0 0.0
    %1105 = vmatpush1.msra.mxu0 0.0
    %1106 = vmatprep.subr.mxu0 0.0
    %1107 = vmatpush1.msra.mxu0 0.0
    %1108 = vmatprep.subr.mxu0 0.0
    %1109 = vmatpush1.msra.mxu0 0.0
    %1110 = vmatprep.subr.mxu0 0.0
    %1111 = vmatpush1.msra.mxu0 0.0
    %1112 = vmatprep.subr.mxu0 0.0
    %1113 = vmatpush1.msra.mxu0 0.0
    %1114 = vmatprep.subr.mxu0 0.0
    %1115 = vmatpush1.msra.mxu0 0.0
    %1116 = vmatprep.subr.mxu0 0.0
    %1117 = vmatpush1.msra.mxu0 0.0
    %1118 = vmatprep.subr.mxu0 0.0
    %1119 = vmatpush1.msra.mxu0 0.0
    %1120 = vmatprep.subr.mxu0 0.0
    %1121 = vmatpush1.msra.mxu0 0.0
    %1122 = vmatprep.subr.mxu0 0.0
    %1123 = vmatpush1.msra.mxu0 0.0
    %1124 = vmatprep.subr.mxu0 %v398
    %1125 = vmatpush1.msra.mxu0 %v395
    %1126 = vmatprep.subr.mxu0 %v377
    %1127 = vmatpush1.msra.mxu0 %v376
    %1128 = vmatprep.subr.mxu0 %v373
    %1129 = vmatpush1.msra.mxu0 %v372
    %1130 = vmatprep.subr.mxu0 %v369
    %1131 = vmatpush1.msra.mxu0 %v368
    %1132 = vmatprep.subr.mxu0 0.0
    %1133 = vmatpush2.msra.mxu0 0.0
    %1134 = vmatprep.subr.mxu0 0.0
    %1135 = vmatpush2.msra.mxu0 0.0
    %1136 = vmatprep.subr.mxu0 0.0
    %1137 = vmatpush2.msra.mxu0 0.0
    %1138 = vmatprep.subr.mxu0 0.0
    %1139 = vmatpush2.msra.mxu0 0.0
    %1140 = vmatprep.subr.mxu0 0.0
    %1141 = vmatpush2.msra.mxu0 0.0
    %1142 = vmatprep.subr.mxu0 0.0
    %1143 = vmatpush2.msra.mxu0 0.0
    %1144 = vmatprep.subr.mxu0 0.0
    %1145 = vmatpush2.msra.mxu0 0.0
    %1146 = vmatprep.subr.mxu0 0.0
    %1147 = vmatpush2.msra.mxu0 0.0
    %1148 = vmatprep.subr.mxu0 0.0
    %1149 = vmatpush2.msra.mxu0 0.0
    %1150 = vmatprep.subr.mxu0 0.0
    %1151 = vmatpush2.msra.mxu0 0.0
    %1152 = vmatprep.subr.mxu0 0.0
    %1153 = vmatpush2.msra.mxu0 0.0
    %1154 = vmatprep.subr.mxu0 0.0
    %1155 = vmatpush2.msra.mxu0 0.0
    %1156 = vmatprep.subr.mxu0 0.0
    %1157 = vmatpush2.msra.mxu0 0.0
    %1158 = vmatprep.subr.mxu0 0.0
    %1159 = vmatpush2.msra.mxu0 0.0
    %1160 = vmatprep.subr.mxu0 0.0
    %1161 = vmatpush2.msra.mxu0 0.0
    %1162 = vmatprep.subr.mxu0 0.0
    %1163 = vmatpush2.msra.mxu0 0.0
    %1164 = vmatprep.mubr.f32.mxu0 0.0
    %1165 = vmatmul.mubr.f32.gmra.mxu0 %v1027
    %v1166 = vpop.f32.mrf.mxu0
    %v1167 = vadd.f32 0.0, %v1166
    %v1168 = vpop.f32.mrf.mxu0
    %v1169 = vadd.f32 0.0, %v1168
    %1170 = vdwg.mxu0
    %v1175 = vcombine.low %v1096, %v1098
    %v1176 = vcombine.low %v1167, %v1169
    %v1178 = vunpack.c.l.s4 1983009808
    %v1179 = vunpack.c.0.s8 %v1178
    %v1180 = vlaneseq
    %v1181 = vshrl.u32 %v1180, 7
    %v1182 = vsub.s32 %v1179, %v1181
    %v1183 = vrot.slane %v1175, %v1182
    %v1185 = vunpack.c.l.s4 1983009808
    %v1186 = vunpack.c.0.s8 %v1185
    %v1187 = vlaneseq
    %v1188 = vshrl.u32 %v1187, 7
    %v1189 = vsub.s32 %v1186, %v1188
    %v1190 = vrot.slane %v1176, %v1189
    %v1191 = vcombine.low %v1183, %v1190
    %v1193 = vadd.f32 %v1025, %v1191
    %v1194 = vxor.u32 %v1193, 2147483648
    %v1195 = vmul.f32 %v1194, 1.442695
    %v1196 = vpow.pop %v1195
    %v1197 = vadd.f32 %v1196, 1.0
    %v1198 = vrcp.pop %v1197
    %v1199 = vmul.f32 1.0, %v1198
    %v1201 = vrot.slane %v1193, 2
    %v1203 = vxor.u32 %v1201, 2147483648
    %v1204 = vmul.f32 %v1203, 1.442695
    %v1205 = vpow.pop %v1204
    %v1206 = vadd.f32 %v1205, 1.0
    %v1207 = vrcp.pop %v1206
    %v1208 = vmul.f32 1.0, %v1207
    %v1209 = vrot.slane %v1193, 4
    %v1211 = vtanh.pop %v1209
    %v1212 = vrot.slane %v1193, 6
    %v1214 = vxor.u32 %v1212, 2147483648
    %v1215 = vmul.f32 %v1214, 1.442695
    %v1216 = vpow.pop %v1215
    %v1217 = vadd.f32 %v1216, 1.0
    %v1218 = vrcp.pop %v1217
    %v1219 = vmul.f32 1.0, %v1218
    %v1220 = vmul.f32 %v1208, %v1013
    %v1221 = vmul.f32 %v1199, %v1211
    %v1222 = vadd.f32 %v1220, %v1221
    %v1223 = vtanh.pop %v1222
    %v1224 = vmul.f32 %v1219, %v1223
    %v1225 = vsel %vm596, %v1224, 0.0
    %v1226 = vrot.slane %v1225, 4
    %v1227 = vadd.f32 %v1225, %v1226
    %v1228 = vrot.slane %v1227, 2
    %v1229 = vadd.f32 %v1227, %v1228
    %v1230 = vrot.slane %v1229, 1
    %v1231 = vadd.f32 %v1229, %v1230
    %1232 = vst.msk [vmem:[#allocation3 + $0x3] sm:$0x1] %vm604, %v1231
    %s1233 = scalar_lea.vmem [#allocation2], 32
    %v1234 = vld [vmem:[%s1233] sm:$0xff]
    %v1236 = vsel %vm383, %v1224, 0
    %1238 = vmatprep.subr.mxu0 0.0
    %1239 = vmatpush1.msra.mxu0 0.0
    %1240 = vmatprep.subr.mxu0 0.0
    %1241 = vmatpush1.msra.mxu0 0.0
    %1242 = vmatprep.subr.mxu0 0.0
    %1243 = vmatpush1.msra.mxu0 0.0
    %1244 = vmatprep.subr.mxu0 0.0
    %1245 = vmatpush1.msra.mxu0 0.0
    %1246 = vmatprep.subr.mxu0 0.0
    %1247 = vmatpush1.msra.mxu0 0.0
    %1248 = vmatprep.subr.mxu0 0.0
    %1249 = vmatpush1.msra.mxu0 0.0
    %1250 = vmatprep.subr.mxu0 0.0
    %1251 = vmatpush1.msra.mxu0 0.0
    %1252 = vmatprep.subr.mxu0 0.0
    %1253 = vmatpush1.msra.mxu0 0.0
    %1254 = vmatprep.subr.mxu0 0.0
    %1255 = vmatpush1.msra.mxu0 0.0
    %1256 = vmatprep.subr.mxu0 0.0
    %1257 = vmatpush1.msra.mxu0 0.0
    %1258 = vmatprep.subr.mxu0 0.0
    %1259 = vmatpush1.msra.mxu0 0.0
    %1260 = vmatprep.subr.mxu0 0.0
    %1261 = vmatpush1.msra.mxu0 0.0
    %1262 = vmatprep.subr.mxu0 %v392
    %1263 = vmatpush1.msra.mxu0 %v389
    %1264 = vmatprep.subr.mxu0 %v375
    %1265 = vmatpush1.msra.mxu0 %v374
    %1266 = vmatprep.subr.mxu0 %v371
    %1267 = vmatpush1.msra.mxu0 %v370
    %1268 = vmatprep.subr.mxu0 %v367
    %1269 = vmatpush1.msra.mxu0 %v366
    %1270 = vmatprep.subr.mxu0 0.0
    %1271 = vmatpush2.msra.mxu0 0.0
    %1272 = vmatprep.subr.mxu0 0.0
    %1273 = vmatpush2.msra.mxu0 0.0
    %1274 = vmatprep.subr.mxu0 0.0
    %1275 = vmatpush2.msra.mxu0 0.0
    %1276 = vmatprep.subr.mxu0 0.0
    %1277 = vmatpush2.msra.mxu0 0.0
    %1278 = vmatprep.subr.mxu0 0.0
    %1279 = vmatpush2.msra.mxu0 0.0
    %1280 = vmatprep.subr.mxu0 0.0
    %1281 = vmatpush2.msra.mxu0 0.0
    %1282 = vmatprep.subr.mxu0 0.0
    %1283 = vmatpush2.msra.mxu0 0.0
    %1284 = vmatprep.subr.mxu0 0.0
    %1285 = vmatpush2.msra.mxu0 0.0
    %1286 = vmatprep.subr.mxu0 0.0
    %1287 = vmatpush2.msra.mxu0 0.0
    %1288 = vmatprep.subr.mxu0 0.0
    %1289 = vmatpush2.msra.mxu0 0.0
    %1290 = vmatprep.subr.mxu0 0.0
    %1291 = vmatpush2.msra.mxu0 0.0
    %1292 = vmatprep.subr.mxu0 0.0
    %1293 = vmatpush2.msra.mxu0 0.0
    %1294 = vmatprep.subr.mxu0 0.0
    %1295 = vmatpush2.msra.mxu0 0.0
    %1296 = vmatprep.subr.mxu0 0.0
    %1297 = vmatpush2.msra.mxu0 0.0
    %1298 = vmatprep.subr.mxu0 0.0
    %1299 = vmatpush2.msra.mxu0 0.0
    %1300 = vmatprep.subr.mxu0 0.0
    %1301 = vmatpush2.msra.mxu0 0.0
    %1302 = vmatprep.mubr.f32.mxu0 0.0
    %1303 = vmatmul.mubr.f32.gmra.mxu0 %v1236
    %v1304 = vpop.f32.mrf.mxu0
    %v1305 = vadd.f32 0.0, %v1304
    %v1306 = vpop.f32.mrf.mxu0
    %v1307 = vadd.f32 0.0, %v1306
    %1308 = vdwg.mxu0
    %1309 = vmatprep.subr.mxu0 0.0
    %1310 = vmatpush1.msra.mxu0 0.0
    %1311 = vmatprep.subr.mxu0 0.0
    %1312 = vmatpush1.msra.mxu0 0.0
    %1313 = vmatprep.subr.mxu0 0.0
    %1314 = vmatpush1.msra.mxu0 0.0
    %1315 = vmatprep.subr.mxu0 0.0
    %1316 = vmatpush1.msra.mxu0 0.0
    %1317 = vmatprep.subr.mxu0 0.0
    %1318 = vmatpush1.msra.mxu0 0.0
    %1319 = vmatprep.subr.mxu0 0.0
    %1320 = vmatpush1.msra.mxu0 0.0
    %1321 = vmatprep.subr.mxu0 0.0
    %1322 = vmatpush1.msra.mxu0 0.0
    %1323 = vmatprep.subr.mxu0 0.0
    %1324 = vmatpush1.msra.mxu0 0.0
    %1325 = vmatprep.subr.mxu0 0.0
    %1326 = vmatpush1.msra.mxu0 0.0
    %1327 = vmatprep.subr.mxu0 0.0
    %1328 = vmatpush1.msra.mxu0 0.0
    %1329 = vmatprep.subr.mxu0 0.0
    %1330 = vmatpush1.msra.mxu0 0.0
    %1331 = vmatprep.subr.mxu0 0.0
    %1332 = vmatpush1.msra.mxu0 0.0
    %1333 = vmatprep.subr.mxu0 %v398
    %1334 = vmatpush1.msra.mxu0 %v395
    %1335 = vmatprep.subr.mxu0 %v377
    %1336 = vmatpush1.msra.mxu0 %v376
    %1337 = vmatprep.subr.mxu0 %v373
    %1338 = vmatpush1.msra.mxu0 %v372
    %1339 = vmatprep.subr.mxu0 %v369
    %1340 = vmatpush1.msra.mxu0 %v368
    %1341 = vmatprep.subr.mxu0 0.0
    %1342 = vmatpush2.msra.mxu0 0.0
    %1343 = vmatprep.subr.mxu0 0.0
    %1344 = vmatpush2.msra.mxu0 0.0
    %1345 = vmatprep.subr.mxu0 0.0
    %1346 = vmatpush2.msra.mxu0 0.0
    %1347 = vmatprep.subr.mxu0 0.0
    %1348 = vmatpush2.msra.mxu0 0.0
    %1349 = vmatprep.subr.mxu0 0.0
    %1350 = vmatpush2.msra.mxu0 0.0
    %1351 = vmatprep.subr.mxu0 0.0
    %1352 = vmatpush2.msra.mxu0 0.0
    %1353 = vmatprep.subr.mxu0 0.0
    %1354 = vmatpush2.msra.mxu0 0.0
    %1355 = vmatprep.subr.mxu0 0.0
    %1356 = vmatpush2.msra.mxu0 0.0
    %1357 = vmatprep.subr.mxu0 0.0
    %1358 = vmatpush2.msra.mxu0 0.0
    %1359 = vmatprep.subr.mxu0 0.0
    %1360 = vmatpush2.msra.mxu0 0.0
    %1361 = vmatprep.subr.mxu0 0.0
    %1362 = vmatpush2.msra.mxu0 0.0
    %1363 = vmatprep.subr.mxu0 0.0
    %1364 = vmatpush2.msra.mxu0 0.0
    %1365 = vmatprep.subr.mxu0 0.0
    %1366 = vmatpush2.msra.mxu0 0.0
    %1367 = vmatprep.subr.mxu0 0.0
    %1368 = vmatpush2.msra.mxu0 0.0
    %1369 = vmatprep.subr.mxu0 0.0
    %1370 = vmatpush2.msra.mxu0 0.0
    %1371 = vmatprep.subr.mxu0 0.0
    %1372 = vmatpush2.msra.mxu0 0.0
    %1373 = vmatprep.mubr.f32.mxu0 0.0
    %1374 = vmatmul.mubr.f32.gmra.mxu0 %v1236
    %v1375 = vpop.f32.mrf.mxu0
    %v1376 = vadd.f32 0.0, %v1375
    %v1377 = vpop.f32.mrf.mxu0
    %v1378 = vadd.f32 0.0, %v1377
    %1379 = vdwg.mxu0
    %v1384 = vcombine.low %v1305, %v1307
    %v1385 = vcombine.low %v1376, %v1378
    %v1387 = vunpack.c.l.s4 1983009808
    %v1388 = vunpack.c.0.s8 %v1387
    %v1389 = vlaneseq
    %v1390 = vshrl.u32 %v1389, 7
    %v1391 = vsub.s32 %v1388, %v1390
    %v1392 = vrot.slane %v1384, %v1391
    %v1394 = vunpack.c.l.s4 1983009808
    %v1395 = vunpack.c.0.s8 %v1394
    %v1396 = vlaneseq
    %v1397 = vshrl.u32 %v1396, 7
    %v1398 = vsub.s32 %v1395, %v1397
    %v1399 = vrot.slane %v1385, %v1398
    %v1400 = vcombine.low %v1392, %v1399
    %v1402 = vadd.f32 %v1234, %v1400
    %v1403 = vxor.u32 %v1402, 2147483648
    %v1404 = vmul.f32 %v1403, 1.442695
    %v1405 = vpow.pop %v1404
    %v1406 = vadd.f32 %v1405, 1.0
    %v1407 = vrcp.pop %v1406
    %v1408 = vmul.f32 1.0, %v1407
    %v1410 = vrot.slane %v1402, 2
    %v1412 = vxor.u32 %v1410, 2147483648
    %v1413 = vmul.f32 %v1412, 1.442695
    %v1414 = vpow.pop %v1413
    %v1415 = vadd.f32 %v1414, 1.0
    %v1416 = vrcp.pop %v1415
    %v1417 = vmul.f32 1.0, %v1416
    %v1418 = vrot.slane %v1402, 4
    %v1420 = vtanh.pop %v1418
    %v1421 = vrot.slane %v1402, 6
    %v1423 = vxor.u32 %v1421, 2147483648
    %v1424 = vmul.f32 %v1423, 1.442695
    %v1425 = vpow.pop %v1424
    %v1426 = vadd.f32 %v1425, 1.0
    %v1427 = vrcp.pop %v1426
    %v1428 = vmul.f32 1.0, %v1427
    %v1429 = vmul.f32 %v1417, %v1222
    %v1430 = vmul.f32 %v1408, %v1420
    %v1431 = vadd.f32 %v1429, %v1430
    %v1432 = vtanh.pop %v1431
    %v1433 = vmul.f32 %v1428, %v1432
    %v1434 = vsel %vm596, %v1433, 0.0
    %v1435 = vrot.slane %v1434, 4
    %v1436 = vadd.f32 %v1434, %v1435
    %v1437 = vrot.slane %v1436, 2
    %v1438 = vadd.f32 %v1436, %v1437
    %v1439 = vrot.slane %v1438, 1
    %v1440 = vadd.f32 %v1438, %v1439
    %1441 = vst.msk [vmem:[#allocation3 + $0x4] sm:$0x1] %vm604, %v1440
    %s1442 = scalar_lea.vmem [#allocation2], 40
    %v1443 = vld [vmem:[%s1442] sm:$0xff]
    %v1445 = vsel %vm383, %v1433, 0
    %1447 = vmatprep.subr.mxu0 0.0
    %1448 = vmatpush1.msra.mxu0 0.0
    %1449 = vmatprep.subr.mxu0 0.0
    %1450 = vmatpush1.msra.mxu0 0.0
    %1451 = vmatprep.subr.mxu0 0.0
    %1452 = vmatpush1.msra.mxu0 0.0
    %1453 = vmatprep.subr.mxu0 0.0
    %1454 = vmatpush1.msra.mxu0 0.0
    %1455 = vmatprep.subr.mxu0 0.0
    %1456 = vmatpush1.msra.mxu0 0.0
    %1457 = vmatprep.subr.mxu0 0.0
    %1458 = vmatpush1.msra.mxu0 0.0
    %1459 = vmatprep.subr.mxu0 0.0
    %1460 = vmatpush1.msra.mxu0 0.0
    %1461 = vmatprep.subr.mxu0 0.0
    %1462 = vmatpush1.msra.mxu0 0.0
    %1463 = vmatprep.subr.mxu0 0.0
    %1464 = vmatpush1.msra.mxu0 0.0
    %1465 = vmatprep.subr.mxu0 0.0
    %1466 = vmatpush1.msra.mxu0 0.0
    %1467 = vmatprep.subr.mxu0 0.0
    %1468 = vmatpush1.msra.mxu0 0.0
    %1469 = vmatprep.subr.mxu0 0.0
    %1470 = vmatpush1.msra.mxu0 0.0
    %1471 = vmatprep.subr.mxu0 %v392
    %1472 = vmatpush1.msra.mxu0 %v389
    %1473 = vmatprep.subr.mxu0 %v375
    %1474 = vmatpush1.msra.mxu0 %v374
    %1475 = vmatprep.subr.mxu0 %v371
    %1476 = vmatpush1.msra.mxu0 %v370
    %1477 = vmatprep.subr.mxu0 %v367
    %1478 = vmatpush1.msra.mxu0 %v366
    %1479 = vmatprep.subr.mxu0 0.0
    %1480 = vmatpush2.msra.mxu0 0.0
    %1481 = vmatprep.subr.mxu0 0.0
    %1482 = vmatpush2.msra.mxu0 0.0
    %1483 = vmatprep.subr.mxu0 0.0
    %1484 = vmatpush2.msra.mxu0 0.0
    %1485 = vmatprep.subr.mxu0 0.0
    %1486 = vmatpush2.msra.mxu0 0.0
    %1487 = vmatprep.subr.mxu0 0.0
    %1488 = vmatpush2.msra.mxu0 0.0
    %1489 = vmatprep.subr.mxu0 0.0
    %1490 = vmatpush2.msra.mxu0 0.0
    %1491 = vmatprep.subr.mxu0 0.0
    %1492 = vmatpush2.msra.mxu0 0.0
    %1493 = vmatprep.subr.mxu0 0.0
    %1494 = vmatpush2.msra.mxu0 0.0
    %1495 = vmatprep.subr.mxu0 0.0
    %1496 = vmatpush2.msra.mxu0 0.0
    %1497 = vmatprep.subr.mxu0 0.0
    %1498 = vmatpush2.msra.mxu0 0.0
    %1499 = vmatprep.subr.mxu0 0.0
    %1500 = vmatpush2.msra.mxu0 0.0
    %1501 = vmatprep.subr.mxu0 0.0
    %1502 = vmatpush2.msra.mxu0 0.0
    %1503 = vmatprep.subr.mxu0 0.0
    %1504 = vmatpush2.msra.mxu0 0.0
    %1505 = vmatprep.subr.mxu0 0.0
    %1506 = vmatpush2.msra.mxu0 0.0
    %1507 = vmatprep.subr.mxu0 0.0
    %1508 = vmatpush2.msra.mxu0 0.0
    %1509 = vmatprep.subr.mxu0 0.0
    %1510 = vmatpush2.msra.mxu0 0.0
    %1511 = vmatprep.mubr.f32.mxu0 0.0
    %1512 = vmatmul.mubr.f32.gmra.mxu0 %v1445
    %v1513 = vpop.f32.mrf.mxu0
    %v1514 = vadd.f32 0.0, %v1513
    %v1515 = vpop.f32.mrf.mxu0
    %v1516 = vadd.f32 0.0, %v1515
    %1517 = vdwg.mxu0
    %1518 = vmatprep.subr.mxu0 0.0
    %1519 = vmatpush1.msra.mxu0 0.0
    %1520 = vmatprep.subr.mxu0 0.0
    %1521 = vmatpush1.msra.mxu0 0.0
    %1522 = vmatprep.subr.mxu0 0.0
    %1523 = vmatpush1.msra.mxu0 0.0
    %1524 = vmatprep.subr.mxu0 0.0
    %1525 = vmatpush1.msra.mxu0 0.0
    %1526 = vmatprep.subr.mxu0 0.0
    %1527 = vmatpush1.msra.mxu0 0.0
    %1528 = vmatprep.subr.mxu0 0.0
    %1529 = vmatpush1.msra.mxu0 0.0
    %1530 = vmatprep.subr.mxu0 0.0
    %1531 = vmatpush1.msra.mxu0 0.0
    %1532 = vmatprep.subr.mxu0 0.0
    %1533 = vmatpush1.msra.mxu0 0.0
    %1534 = vmatprep.subr.mxu0 0.0
    %1535 = vmatpush1.msra.mxu0 0.0
    %1536 = vmatprep.subr.mxu0 0.0
    %1537 = vmatpush1.msra.mxu0 0.0
    %1538 = vmatprep.subr.mxu0 0.0
    %1539 = vmatpush1.msra.mxu0 0.0
    %1540 = vmatprep.subr.mxu0 0.0
    %1541 = vmatpush1.msra.mxu0 0.0
    %1542 = vmatprep.subr.mxu0 %v398
    %1543 = vmatpush1.msra.mxu0 %v395
    %1544 = vmatprep.subr.mxu0 %v377
    %1545 = vmatpush1.msra.mxu0 %v376
    %1546 = vmatprep.subr.mxu0 %v373
    %1547 = vmatpush1.msra.mxu0 %v372
    %1548 = vmatprep.subr.mxu0 %v369
    %1549 = vmatpush1.msra.mxu0 %v368
    %1550 = vmatprep.subr.mxu0 0.0
    %1551 = vmatpush2.msra.mxu0 0.0
    %1552 = vmatprep.subr.mxu0 0.0
    %1553 = vmatpush2.msra.mxu0 0.0
    %1554 = vmatprep.subr.mxu0 0.0
    %1555 = vmatpush2.msra.mxu0 0.0
    %1556 = vmatprep.subr.mxu0 0.0
    %1557 = vmatpush2.msra.mxu0 0.0
    %1558 = vmatprep.subr.mxu0 0.0
    %1559 = vmatpush2.msra.mxu0 0.0
    %1560 = vmatprep.subr.mxu0 0.0
    %1561 = vmatpush2.msra.mxu0 0.0
    %1562 = vmatprep.subr.mxu0 0.0
    %1563 = vmatpush2.msra.mxu0 0.0
    %1564 = vmatprep.subr.mxu0 0.0
    %1565 = vmatpush2.msra.mxu0 0.0
    %1566 = vmatprep.subr.mxu0 0.0
    %1567 = vmatpush2.msra.mxu0 0.0
    %1568 = vmatprep.subr.mxu0 0.0
    %1569 = vmatpush2.msra.mxu0 0.0
    %1570 = vmatprep.subr.mxu0 0.0
    %1571 = vmatpush2.msra.mxu0 0.0
    %1572 = vmatprep.subr.mxu0 0.0
    %1573 = vmatpush2.msra.mxu0 0.0
    %1574 = vmatprep.subr.mxu0 0.0
    %1575 = vmatpush2.msra.mxu0 0.0
    %1576 = vmatprep.subr.mxu0 0.0
    %1577 = vmatpush2.msra.mxu0 0.0
    %1578 = vmatprep.subr.mxu0 0.0
    %1579 = vmatpush2.msra.mxu0 0.0
    %1580 = vmatprep.subr.mxu0 0.0
    %1581 = vmatpush2.msra.mxu0 0.0
    %1582 = vmatprep.mubr.f32.mxu0 0.0
    %1583 = vmatmul.mubr.f32.gmra.mxu0 %v1445
    %v1584 = vpop.f32.mrf.mxu0
    %v1585 = vadd.f32 0.0, %v1584
    %v1586 = vpop.f32.mrf.mxu0
    %v1587 = vadd.f32 0.0, %v1586
    %1588 = vdwg.mxu0
    %v1593 = vcombine.low %v1514, %v1516
    %v1594 = vcombine.low %v1585, %v1587
    %v1596 = vunpack.c.l.s4 1983009808
    %v1597 = vunpack.c.0.s8 %v1596
    %v1598 = vlaneseq
    %v1599 = vshrl.u32 %v1598, 7
    %v1600 = vsub.s32 %v1597, %v1599
    %v1601 = vrot.slane %v1593, %v1600
    %v1603 = vunpack.c.l.s4 1983009808
    %v1604 = vunpack.c.0.s8 %v1603
    %v1605 = vlaneseq
    %v1606 = vshrl.u32 %v1605, 7
    %v1607 = vsub.s32 %v1604, %v1606
    %v1608 = vrot.slane %v1594, %v1607
    %v1609 = vcombine.low %v1601, %v1608
    %v1611 = vadd.f32 %v1443, %v1609
    %v1612 = vxor.u32 %v1611, 2147483648
    %v1613 = vmul.f32 %v1612, 1.442695
    %v1614 = vpow.pop %v1613
    %v1615 = vadd.f32 %v1614, 1.0
    %v1616 = vrcp.pop %v1615
    %v1617 = vmul.f32 1.0, %v1616
    %v1619 = vrot.slane %v1611, 2
    %v1621 = vxor.u32 %v1619, 2147483648
    %v1622 = vmul.f32 %v1621, 1.442695
    %v1623 = vpow.pop %v1622
    %v1624 = vadd.f32 %v1623, 1.0
    %v1625 = vrcp.pop %v1624
    %v1626 = vmul.f32 1.0, %v1625
    %v1627 = vrot.slane %v1611, 4
    %v1629 = vtanh.pop %v1627
    %v1630 = vrot.slane %v1611, 6
    %v1632 = vxor.u32 %v1630, 2147483648
    %v1633 = vmul.f32 %v1632, 1.442695
    %v1634 = vpow.pop %v1633
    %v1635 = vadd.f32 %v1634, 1.0
    %v1636 = vrcp.pop %v1635
    %v1637 = vmul.f32 1.0, %v1636
    %v1638 = vmul.f32 %v1626, %v1431
    %v1639 = vmul.f32 %v1617, %v1629
    %v1640 = vadd.f32 %v1638, %v1639
    %v1641 = vtanh.pop %v1640
    %v1642 = vmul.f32 %v1637, %v1641
    %v1643 = vsel %vm596, %v1642, 0.0
    %v1644 = vrot.slane %v1643, 4
    %v1645 = vadd.f32 %v1643, %v1644
    %v1646 = vrot.slane %v1645, 2
    %v1647 = vadd.f32 %v1645, %v1646
    %v1648 = vrot.slane %v1647, 1
    %v1649 = vadd.f32 %v1647, %v1648
    %1650 = vst.msk [vmem:[#allocation3 + $0x5] sm:$0x1] %vm604, %v1649
    %s1651 = scalar_lea.vmem [#allocation2], 48
    %v1652 = vld [vmem:[%s1651] sm:$0xff]
    %v1654 = vsel %vm383, %v1642, 0
    %1656 = vmatprep.subr.mxu0 0.0
    %1657 = vmatpush1.msra.mxu0 0.0
    %1658 = vmatprep.subr.mxu0 0.0
    %1659 = vmatpush1.msra.mxu0 0.0
    %1660 = vmatprep.subr.mxu0 0.0
    %1661 = vmatpush1.msra.mxu0 0.0
    %1662 = vmatprep.subr.mxu0 0.0
    %1663 = vmatpush1.msra.mxu0 0.0
    %1664 = vmatprep.subr.mxu0 0.0
    %1665 = vmatpush1.msra.mxu0 0.0
    %1666 = vmatprep.subr.mxu0 0.0
    %1667 = vmatpush1.msra.mxu0 0.0
    %1668 = vmatprep.subr.mxu0 0.0
    %1669 = vmatpush1.msra.mxu0 0.0
    %1670 = vmatprep.subr.mxu0 0.0
    %1671 = vmatpush1.msra.mxu0 0.0
    %1672 = vmatprep.subr.mxu0 0.0
    %1673 = vmatpush1.msra.mxu0 0.0
    %1674 = vmatprep.subr.mxu0 0.0
    %1675 = vmatpush1.msra.mxu0 0.0
    %1676 = vmatprep.subr.mxu0 0.0
    %1677 = vmatpush1.msra.mxu0 0.0
    %1678 = vmatprep.subr.mxu0 0.0
    %1679 = vmatpush1.msra.mxu0 0.0
    %1680 = vmatprep.subr.mxu0 %v392
    %1681 = vmatpush1.msra.mxu0 %v389
    %1682 = vmatprep.subr.mxu0 %v375
    %1683 = vmatpush1.msra.mxu0 %v374
    %1684 = vmatprep.subr.mxu0 %v371
    %1685 = vmatpush1.msra.mxu0 %v370
    %1686 = vmatprep.subr.mxu0 %v367
    %1687 = vmatpush1.msra.mxu0 %v366
    %1688 = vmatprep.subr.mxu0 0.0
    %1689 = vmatpush2.msra.mxu0 0.0
    %1690 = vmatprep.subr.mxu0 0.0
    %1691 = vmatpush2.msra.mxu0 0.0
    %1692 = vmatprep.subr.mxu0 0.0
    %1693 = vmatpush2.msra.mxu0 0.0
    %1694 = vmatprep.subr.mxu0 0.0
    %1695 = vmatpush2.msra.mxu0 0.0
    %1696 = vmatprep.subr.mxu0 0.0
    %1697 = vmatpush2.msra.mxu0 0.0
    %1698 = vmatprep.subr.mxu0 0.0
    %1699 = vmatpush2.msra.mxu0 0.0
    %1700 = vmatprep.subr.mxu0 0.0
    %1701 = vmatpush2.msra.mxu0 0.0
    %1702 = vmatprep.subr.mxu0 0.0
    %1703 = vmatpush2.msra.mxu0 0.0
    %1704 = vmatprep.subr.mxu0 0.0
    %1705 = vmatpush2.msra.mxu0 0.0
    %1706 = vmatprep.subr.mxu0 0.0
    %1707 = vmatpush2.msra.mxu0 0.0
    %1708 = vmatprep.subr.mxu0 0.0
    %1709 = vmatpush2.msra.mxu0 0.0
    %1710 = vmatprep.subr.mxu0 0.0
    %1711 = vmatpush2.msra.mxu0 0.0
    %1712 = vmatprep.subr.mxu0 0.0
    %1713 = vmatpush2.msra.mxu0 0.0
    %1714 = vmatprep.subr.mxu0 0.0
    %1715 = vmatpush2.msra.mxu0 0.0
    %1716 = vmatprep.subr.mxu0 0.0
    %1717 = vmatpush2.msra.mxu0 0.0
    %1718 = vmatprep.subr.mxu0 0.0
    %1719 = vmatpush2.msra.mxu0 0.0
    %1720 = vmatprep.mubr.f32.mxu0 0.0
    %1721 = vmatmul.mubr.f32.gmra.mxu0 %v1654
    %v1722 = vpop.f32.mrf.mxu0
    %v1723 = vadd.f32 0.0, %v1722
    %v1724 = vpop.f32.mrf.mxu0
    %v1725 = vadd.f32 0.0, %v1724
    %1726 = vdwg.mxu0
    %1727 = vmatprep.subr.mxu0 0.0
    %1728 = vmatpush1.msra.mxu0 0.0
    %1729 = vmatprep.subr.mxu0 0.0
    %1730 = vmatpush1.msra.mxu0 0.0
    %1731 = vmatprep.subr.mxu0 0.0
    %1732 = vmatpush1.msra.mxu0 0.0
    %1733 = vmatprep.subr.mxu0 0.0
    %1734 = vmatpush1.msra.mxu0 0.0
    %1735 = vmatprep.subr.mxu0 0.0
    %1736 = vmatpush1.msra.mxu0 0.0
    %1737 = vmatprep.subr.mxu0 0.0
    %1738 = vmatpush1.msra.mxu0 0.0
    %1739 = vmatprep.subr.mxu0 0.0
    %1740 = vmatpush1.msra.mxu0 0.0
    %1741 = vmatprep.subr.mxu0 0.0
    %1742 = vmatpush1.msra.mxu0 0.0
    %1743 = vmatprep.subr.mxu0 0.0
    %1744 = vmatpush1.msra.mxu0 0.0
    %1745 = vmatprep.subr.mxu0 0.0
    %1746 = vmatpush1.msra.mxu0 0.0
    %1747 = vmatprep.subr.mxu0 0.0
    %1748 = vmatpush1.msra.mxu0 0.0
    %1749 = vmatprep.subr.mxu0 0.0
    %1750 = vmatpush1.msra.mxu0 0.0
    %1751 = vmatprep.subr.mxu0 %v398
    %1752 = vmatpush1.msra.mxu0 %v395
    %1753 = vmatprep.subr.mxu0 %v377
    %1754 = vmatpush1.msra.mxu0 %v376
    %1755 = vmatprep.subr.mxu0 %v373
    %1756 = vmatpush1.msra.mxu0 %v372
    %1757 = vmatprep.subr.mxu0 %v369
    %1758 = vmatpush1.msra.mxu0 %v368
    %1759 = vmatprep.subr.mxu0 0.0
    %1760 = vmatpush2.msra.mxu0 0.0
    %1761 = vmatprep.subr.mxu0 0.0
    %1762 = vmatpush2.msra.mxu0 0.0
    %1763 = vmatprep.subr.mxu0 0.0
    %1764 = vmatpush2.msra.mxu0 0.0
    %1765 = vmatprep.subr.mxu0 0.0
    %1766 = vmatpush2.msra.mxu0 0.0
    %1767 = vmatprep.subr.mxu0 0.0
    %1768 = vmatpush2.msra.mxu0 0.0
    %1769 = vmatprep.subr.mxu0 0.0
    %1770 = vmatpush2.msra.mxu0 0.0
    %1771 = vmatprep.subr.mxu0 0.0
    %1772 = vmatpush2.msra.mxu0 0.0
    %1773 = vmatprep.subr.mxu0 0.0
    %1774 = vmatpush2.msra.mxu0 0.0
    %1775 = vmatprep.subr.mxu0 0.0
    %1776 = vmatpush2.msra.mxu0 0.0
    %1777 = vmatprep.subr.mxu0 0.0
    %1778 = vmatpush2.msra.mxu0 0.0
    %1779 = vmatprep.subr.mxu0 0.0
    %1780 = vmatpush2.msra.mxu0 0.0
    %1781 = vmatprep.subr.mxu0 0.0
    %1782 = vmatpush2.msra.mxu0 0.0
    %1783 = vmatprep.subr.mxu0 0.0
    %1784 = vmatpush2.msra.mxu0 0.0
    %1785 = vmatprep.subr.mxu0 0.0
    %1786 = vmatpush2.msra.mxu0 0.0
    %1787 = vmatprep.subr.mxu0 0.0
    %1788 = vmatpush2.msra.mxu0 0.0
    %1789 = vmatprep.subr.mxu0 0.0
    %1790 = vmatpush2.msra.mxu0 0.0
    %1791 = vmatprep.mubr.f32.mxu0 0.0
    %1792 = vmatmul.mubr.f32.gmra.mxu0 %v1654
    %v1793 = vpop.f32.mrf.mxu0
    %v1794 = vadd.f32 0.0, %v1793
    %v1795 = vpop.f32.mrf.mxu0
    %v1796 = vadd.f32 0.0, %v1795
    %1797 = vdwg.mxu0
    %v1802 = vcombine.low %v1723, %v1725
    %v1803 = vcombine.low %v1794, %v1796
    %v1805 = vunpack.c.l.s4 1983009808
    %v1806 = vunpack.c.0.s8 %v1805
    %v1807 = vlaneseq
    %v1808 = vshrl.u32 %v1807, 7
    %v1809 = vsub.s32 %v1806, %v1808
    %v1810 = vrot.slane %v1802, %v1809
    %v1812 = vunpack.c.l.s4 1983009808
    %v1813 = vunpack.c.0.s8 %v1812
    %v1814 = vlaneseq
    %v1815 = vshrl.u32 %v1814, 7
    %v1816 = vsub.s32 %v1813, %v1815
    %v1817 = vrot.slane %v1803, %v1816
    %v1818 = vcombine.low %v1810, %v1817
    %v1820 = vadd.f32 %v1652, %v1818
    %v1821 = vxor.u32 %v1820, 2147483648
    %v1822 = vmul.f32 %v1821, 1.442695
    %v1823 = vpow.pop %v1822
    %v1824 = vadd.f32 %v1823, 1.0
    %v1825 = vrcp.pop %v1824
    %v1826 = vmul.f32 1.0, %v1825
    %v1828 = vrot.slane %v1820, 2
    %v1830 = vxor.u32 %v1828, 2147483648
    %v1831 = vmul.f32 %v1830, 1.442695
    %v1832 = vpow.pop %v1831
    %v1833 = vadd.f32 %v1832, 1.0
    %v1834 = vrcp.pop %v1833
    %v1835 = vmul.f32 1.0, %v1834
    %v1836 = vrot.slane %v1820, 4
    %v1838 = vtanh.pop %v1836
    %v1839 = vrot.slane %v1820, 6
    %v1841 = vxor.u32 %v1839, 2147483648
    %v1842 = vmul.f32 %v1841, 1.442695
    %v1843 = vpow.pop %v1842
    %v1844 = vadd.f32 %v1843, 1.0
    %v1845 = vrcp.pop %v1844
    %v1846 = vmul.f32 1.0, %v1845
    %v1847 = vmul.f32 %v1835, %v1640
    %v1848 = vmul.f32 %v1826, %v1838
    %v1849 = vadd.f32 %v1847, %v1848
    %v1850 = vtanh.pop %v1849
    %v1851 = vmul.f32 %v1846, %v1850
    %v1852 = vsel %vm596, %v1851, 0.0
    %v1853 = vrot.slane %v1852, 4
    %v1854 = vadd.f32 %v1852, %v1853
    %v1855 = vrot.slane %v1854, 2
    %v1856 = vadd.f32 %v1854, %v1855
    %v1857 = vrot.slane %v1856, 1
    %v1858 = vadd.f32 %v1856, %v1857
    %1859 = vst.msk [vmem:[#allocation3 + $0x6] sm:$0x1] %vm604, %v1858
    %s1860 = scalar_lea.vmem [#allocation2], 56
    %v1861 = vld [vmem:[%s1860] sm:$0xff]
    %v1863 = vsel %vm383, %v1851, 0
    %1865 = vmatprep.subr.mxu0 0.0
    %1866 = vmatpush1.msra.mxu0 0.0
    %1867 = vmatprep.subr.mxu0 0.0
    %1868 = vmatpush1.msra.mxu0 0.0
    %1869 = vmatprep.subr.mxu0 0.0
    %1870 = vmatpush1.msra.mxu0 0.0
    %1871 = vmatprep.subr.mxu0 0.0
    %1872 = vmatpush1.msra.mxu0 0.0
    %1873 = vmatprep.subr.mxu0 0.0
    %1874 = vmatpush1.msra.mxu0 0.0
    %1875 = vmatprep.subr.mxu0 0.0
    %1876 = vmatpush1.msra.mxu0 0.0
    %1877 = vmatprep.subr.mxu0 0.0
    %1878 = vmatpush1.msra.mxu0 0.0
    %1879 = vmatprep.subr.mxu0 0.0
    %1880 = vmatpush1.msra.mxu0 0.0
    %1881 = vmatprep.subr.mxu0 0.0
    %1882 = vmatpush1.msra.mxu0 0.0
    %1883 = vmatprep.subr.mxu0 0.0
    %1884 = vmatpush1.msra.mxu0 0.0
    %1885 = vmatprep.subr.mxu0 0.0
    %1886 = vmatpush1.msra.mxu0 0.0
    %1887 = vmatprep.subr.mxu0 0.0
    %1888 = vmatpush1.msra.mxu0 0.0
    %1889 = vmatprep.subr.mxu0 %v392
    %1890 = vmatpush1.msra.mxu0 %v389
    %1891 = vmatprep.subr.mxu0 %v375
    %1892 = vmatpush1.msra.mxu0 %v374
    %1893 = vmatprep.subr.mxu0 %v371
    %1894 = vmatpush1.msra.mxu0 %v370
    %1895 = vmatprep.subr.mxu0 %v367
    %1896 = vmatpush1.msra.mxu0 %v366
    %1897 = vmatprep.subr.mxu0 0.0
    %1898 = vmatpush2.msra.mxu0 0.0
    %1899 = vmatprep.subr.mxu0 0.0
    %1900 = vmatpush2.msra.mxu0 0.0
    %1901 = vmatprep.subr.mxu0 0.0
    %1902 = vmatpush2.msra.mxu0 0.0
    %1903 = vmatprep.subr.mxu0 0.0
    %1904 = vmatpush2.msra.mxu0 0.0
    %1905 = vmatprep.subr.mxu0 0.0
    %1906 = vmatpush2.msra.mxu0 0.0
    %1907 = vmatprep.subr.mxu0 0.0
    %1908 = vmatpush2.msra.mxu0 0.0
    %1909 = vmatprep.subr.mxu0 0.0
    %1910 = vmatpush2.msra.mxu0 0.0
    %1911 = vmatprep.subr.mxu0 0.0
    %1912 = vmatpush2.msra.mxu0 0.0
    %1913 = vmatprep.subr.mxu0 0.0
    %1914 = vmatpush2.msra.mxu0 0.0
    %1915 = vmatprep.subr.mxu0 0.0
    %1916 = vmatpush2.msra.mxu0 0.0
    %1917 = vmatprep.subr.mxu0 0.0
    %1918 = vmatpush2.msra.mxu0 0.0
    %1919 = vmatprep.subr.mxu0 0.0
    %1920 = vmatpush2.msra.mxu0 0.0
    %1921 = vmatprep.subr.mxu0 0.0
    %1922 = vmatpush2.msra.mxu0 0.0
    %1923 = vmatprep.subr.mxu0 0.0
    %1924 = vmatpush2.msra.mxu0 0.0
    %1925 = vmatprep.subr.mxu0 0.0
    %1926 = vmatpush2.msra.mxu0 0.0
    %1927 = vmatprep.subr.mxu0 0.0
    %1928 = vmatpush2.msra.mxu0 0.0
    %1929 = vmatprep.mubr.f32.mxu0 0.0
    %1930 = vmatmul.mubr.f32.gmra.mxu0 %v1863
    %v1931 = vpop.f32.mrf.mxu0
    %v1932 = vadd.f32 0.0, %v1931
    %v1933 = vpop.f32.mrf.mxu0
    %v1934 = vadd.f32 0.0, %v1933
    %1935 = vdwg.mxu0
    %1936 = vmatprep.subr.mxu0 0.0
    %1937 = vmatpush1.msra.mxu0 0.0
    %1938 = vmatprep.subr.mxu0 0.0
    %1939 = vmatpush1.msra.mxu0 0.0
    %1940 = vmatprep.subr.mxu0 0.0
    %1941 = vmatpush1.msra.mxu0 0.0
    %1942 = vmatprep.subr.mxu0 0.0
    %1943 = vmatpush1.msra.mxu0 0.0
    %1944 = vmatprep.subr.mxu0 0.0
    %1945 = vmatpush1.msra.mxu0 0.0
    %1946 = vmatprep.subr.mxu0 0.0
    %1947 = vmatpush1.msra.mxu0 0.0
    %1948 = vmatprep.subr.mxu0 0.0
    %1949 = vmatpush1.msra.mxu0 0.0
    %1950 = vmatprep.subr.mxu0 0.0
    %1951 = vmatpush1.msra.mxu0 0.0
    %1952 = vmatprep.subr.mxu0 0.0
    %1953 = vmatpush1.msra.mxu0 0.0
    %1954 = vmatprep.subr.mxu0 0.0
    %1955 = vmatpush1.msra.mxu0 0.0
    %1956 = vmatprep.subr.mxu0 0.0
    %1957 = vmatpush1.msra.mxu0 0.0
    %1958 = vmatprep.subr.mxu0 0.0
    %1959 = vmatpush1.msra.mxu0 0.0
    %1960 = vmatprep.subr.mxu0 %v398
    %1961 = vmatpush1.msra.mxu0 %v395
    %1962 = vmatprep.subr.mxu0 %v377
    %1963 = vmatpush1.msra.mxu0 %v376
    %1964 = vmatprep.subr.mxu0 %v373
    %1965 = vmatpush1.msra.mxu0 %v372
    %1966 = vmatprep.subr.mxu0 %v369
    %1967 = vmatpush1.msra.mxu0 %v368
    %1968 = vmatprep.subr.mxu0 0.0
    %1969 = vmatpush2.msra.mxu0 0.0
    %1970 = vmatprep.subr.mxu0 0.0
    %1971 = vmatpush2.msra.mxu0 0.0
    %1972 = vmatprep.subr.mxu0 0.0
    %1973 = vmatpush2.msra.mxu0 0.0
    %1974 = vmatprep.subr.mxu0 0.0
    %1975 = vmatpush2.msra.mxu0 0.0
    %1976 = vmatprep.subr.mxu0 0.0
    %1977 = vmatpush2.msra.mxu0 0.0
    %1978 = vmatprep.subr.mxu0 0.0
    %1979 = vmatpush2.msra.mxu0 0.0
    %1980 = vmatprep.subr.mxu0 0.0
    %1981 = vmatpush2.msra.mxu0 0.0
    %1982 = vmatprep.subr.mxu0 0.0
    %1983 = vmatpush2.msra.mxu0 0.0
    %1984 = vmatprep.subr.mxu0 0.0
    %1985 = vmatpush2.msra.mxu0 0.0
    %1986 = vmatprep.subr.mxu0 0.0
    %1987 = vmatpush2.msra.mxu0 0.0
    %1988 = vmatprep.subr.mxu0 0.0
    %1989 = vmatpush2.msra.mxu0 0.0
    %1990 = vmatprep.subr.mxu0 0.0
    %1991 = vmatpush2.msra.mxu0 0.0
    %1992 = vmatprep.subr.mxu0 0.0
    %1993 = vmatpush2.msra.mxu0 0.0
    %1994 = vmatprep.subr.mxu0 0.0
    %1995 = vmatpush2.msra.mxu0 0.0
    %1996 = vmatprep.subr.mxu0 0.0
    %1997 = vmatpush2.msra.mxu0 0.0
    %1998 = vmatprep.subr.mxu0 0.0
    %1999 = vmatpush2.msra.mxu0 0.0
    %2000 = vmatprep.mubr.f32.mxu0 0.0
    %2001 = vmatmul.mubr.f32.gmra.mxu0 %v1863
    %v2002 = vpop.f32.mrf.mxu0
    %v2003 = vadd.f32 0.0, %v2002
    %v2004 = vpop.f32.mrf.mxu0
    %v2005 = vadd.f32 0.0, %v2004
    %2006 = vdwg.mxu0
    %v2011 = vcombine.low %v1932, %v1934
    %v2012 = vcombine.low %v2003, %v2005
    %v2014 = vunpack.c.l.s4 1983009808
    %v2015 = vunpack.c.0.s8 %v2014
    %v2016 = vlaneseq
    %v2017 = vshrl.u32 %v2016, 7
    %v2018 = vsub.s32 %v2015, %v2017
    %v2019 = vrot.slane %v2011, %v2018
    %v2021 = vunpack.c.l.s4 1983009808
    %v2022 = vunpack.c.0.s8 %v2021
    %v2023 = vlaneseq
    %v2024 = vshrl.u32 %v2023, 7
    %v2025 = vsub.s32 %v2022, %v2024
    %v2026 = vrot.slane %v2012, %v2025
    %v2027 = vcombine.low %v2019, %v2026
    %v2029 = vadd.f32 %v1861, %v2027
    %v2030 = vxor.u32 %v2029, 2147483648
    %v2031 = vmul.f32 %v2030, 1.442695
    %v2032 = vpow.pop %v2031
    %v2033 = vadd.f32 %v2032, 1.0
    %v2034 = vrcp.pop %v2033
    %v2035 = vmul.f32 1.0, %v2034
    %v2037 = vrot.slane %v2029, 2
    %v2039 = vxor.u32 %v2037, 2147483648
    %v2040 = vmul.f32 %v2039, 1.442695
    %v2041 = vpow.pop %v2040
    %v2042 = vadd.f32 %v2041, 1.0
    %v2043 = vrcp.pop %v2042
    %v2044 = vmul.f32 1.0, %v2043
    %v2045 = vrot.slane %v2029, 4
    %v2047 = vtanh.pop %v2045
    %v2048 = vrot.slane %v2029, 6
    %v2050 = vxor.u32 %v2048, 2147483648
    %v2051 = vmul.f32 %v2050, 1.442695
    %v2052 = vpow.pop %v2051
    %v2053 = vadd.f32 %v2052, 1.0
    %v2054 = vrcp.pop %v2053
    %v2055 = vmul.f32 1.0, %v2054
    %v2056 = vmul.f32 %v2044, %v1849
    %v2057 = vmul.f32 %v2035, %v2047
    %v2058 = vadd.f32 %v2056, %v2057
    %v2059 = vtanh.pop %v2058
    %v2060 = vmul.f32 %v2055, %v2059
    %v2061 = vsel %vm596, %v2060, 0.0
    %v2062 = vrot.slane %v2061, 4
    %v2063 = vadd.f32 %v2061, %v2062
    %v2064 = vrot.slane %v2063, 2
    %v2065 = vadd.f32 %v2063, %v2064
    %v2066 = vrot.slane %v2065, 1
    %v2067 = vadd.f32 %v2065, %v2066
    %2068 = vst.msk [vmem:[#allocation3 + $0x7] sm:$0x1] %vm604, %v2067
    %v2069 = vld [vmem:[#allocation3] sm:$0xff]
    %v2070 = vld [vmem:[#allocation7] sm:$0xff]
    %v2071 = vld [vmem:[#allocation7 + $0x8] sm:$0xff]
    %v2072 = vld [vmem:[#allocation7 + $0x10] sm:$0xff]
    %v2073 = vld [vmem:[#allocation7 + $0x18] sm:$0xf]
    %v2074 = vld [vmem:[%s4] sm:$0x1]
    %v2076 = vlaneseq
    %v2077 = vshrl.u32 %v2076, 7
    %v2078 = vsub.s32 0, %v2077
    %v2079 = vrot.slane %v2074, %v2078
    %v2082 = vsel %vm383, %v2069, 0
    %v2085 = vsel %vm387, %v2073, 0
    %2087 = vmatprep.subr.mxu0 0.0
    %2088 = vmatpush1.msra.mxu0 0.0
    %2089 = vmatprep.subr.mxu0 0.0
    %2090 = vmatpush1.msra.mxu0 0.0
    %2091 = vmatprep.subr.mxu0 0.0
    %2092 = vmatpush1.msra.mxu0 0.0
    %2093 = vmatprep.subr.mxu0 0.0
    %2094 = vmatpush1.msra.mxu0 0.0
    %2095 = vmatprep.subr.mxu0 0.0
    %2096 = vmatpush1.msra.mxu0 0.0
    %2097 = vmatprep.subr.mxu0 0.0
    %2098 = vmatpush1.msra.mxu0 0.0
    %2099 = vmatprep.subr.mxu0 0.0
    %2100 = vmatpush1.msra.mxu0 0.0
    %2101 = vmatprep.subr.mxu0 0.0
    %2102 = vmatpush1.msra.mxu0 0.0
    %2103 = vmatprep.subr.mxu0 0.0
    %2104 = vmatpush1.msra.mxu0 0.0
    %2105 = vmatprep.subr.mxu0 0.0
    %2106 = vmatpush1.msra.mxu0 0.0
    %2107 = vmatprep.subr.mxu0 0.0
    %2108 = vmatpush1.msra.mxu0 0.0
    %2109 = vmatprep.subr.mxu0 0.0
    %2110 = vmatpush1.msra.mxu0 0.0
    %2111 = vmatprep.subr.mxu0 0.0
    %2112 = vmatpush1.msra.mxu0 %v2085
    %2113 = vmatprep.subr.mxu0 0.0
    %2114 = vmatpush1.msra.mxu0 %v2072
    %2115 = vmatprep.subr.mxu0 0.0
    %2116 = vmatpush1.msra.mxu0 %v2071
    %2117 = vmatprep.subr.mxu0 0.0
    %2118 = vmatpush1.msra.mxu0 %v2070
    %2119 = vmatprep.subr.mxu0 0.0
    %2120 = vmatpush2.msra.mxu0 0.0
    %2121 = vmatprep.subr.mxu0 0.0
    %2122 = vmatpush2.msra.mxu0 0.0
    %2123 = vmatprep.subr.mxu0 0.0
    %2124 = vmatpush2.msra.mxu0 0.0
    %2125 = vmatprep.subr.mxu0 0.0
    %2126 = vmatpush2.msra.mxu0 0.0
    %2127 = vmatprep.subr.mxu0 0.0
    %2128 = vmatpush2.msra.mxu0 0.0
    %2129 = vmatprep.subr.mxu0 0.0
    %2130 = vmatpush2.msra.mxu0 0.0
    %2131 = vmatprep.subr.mxu0 0.0
    %2132 = vmatpush2.msra.mxu0 0.0
    %2133 = vmatprep.subr.mxu0 0.0
    %2134 = vmatpush2.msra.mxu0 0.0
    %2135 = vmatprep.subr.mxu0 0.0
    %2136 = vmatpush2.msra.mxu0 0.0
    %2137 = vmatprep.subr.mxu0 0.0
    %2138 = vmatpush2.msra.mxu0 0.0
    %2139 = vmatprep.subr.mxu0 0.0
    %2140 = vmatpush2.msra.mxu0 0.0
    %2141 = vmatprep.subr.mxu0 0.0
    %2142 = vmatpush2.msra.mxu0 0.0
    %2143 = vmatprep.subr.mxu0 0.0
    %2144 = vmatpush2.msra.mxu0 0.0
    %2145 = vmatprep.subr.mxu0 0.0
    %2146 = vmatpush2.msra.mxu0 0.0
    %2147 = vmatprep.subr.mxu0 0.0
    %2148 = vmatpush2.msra.mxu0 0.0
    %2149 = vmatprep.subr.mxu0 0.0
    %2150 = vmatpush2.msra.mxu0 0.0
    %2151 = vmatprep.mubr.f32.mxu0 0.0
    %2152 = vmatmul.mubr.f32.gmra.mxu0 %v2082
    %v2153 = vpop.f32.mrf.mxu0
    %v2154 = vadd.f32 %v2079, %v2153
    %v2155 = vpop.f32.mrf.mxu0
    %2156 = vdwg.mxu0
    %2157 = vst [vmem:[#allocation9] sm:$0xff] %v2154
    // Predicated region
    $region30: #{tpu_custom_call.1} parent=1 // pred_check
      _
    $region31: #{tpu_custom_call.1} parent=1 // pred_check_branch
      %2159 = sbr.rel (0) target = $region33
    $region32: #{tpu_custom_call.1} parent=1 // pred_region
      %s2161 = ssub.s32 128, 128
      %2162 = vsyncadd [#allocation6], %s2161
      %s2164 = sshll.u32 [#allocation9], 4
      %s2165 = int_to_ptr.vmem [resolvable:$true] %s2164
      %2167 = dma.vmem_to_hbm [thread:$0]  %s2165, 128, %s5, [#allocation6]
    $region33: #{tpu_custom_call.1} parent=1 // pred_fallthru
      _
    // Predicated region
    $region34: #{tpu_custom_call.1} parent=1 // pred_check
      _
    $region35: #{tpu_custom_call.1} parent=1 // pred_check_branch
      %2169 = sbr.rel (0) target = $region37
    $region36: #{tpu_custom_call.1} parent=1 // pred_region
      %2170 = dma.done [#allocation6], 128
    $region37: #{tpu_custom_call.1} parent=1 // pred_fallthru
      _
    %2171 = vsyncpa [#allocation5], 1
    %2172 = vsyncpa [#allocation8], 1
    %2173 = vsyncpa [#allocation6], 1

</llo_original>
